<compile_context>
chip_gen: v6e
topology: v6e:2x2x1
jax: 0.10.0
libtpu: 0.0.40
codegen_flags: <defaults>
</compile_context>

<pallas_src>
import math

import jax
import jax.numpy as jnp
from jax import lax
from jax.experimental import pallas as pl
from jax.experimental.pallas import tpu as pltpu

EPS = 1e-6
ACT_DTYPE = jnp.bfloat16  # MXU operand dtype

_COMPILER_PARAMS = pltpu.CompilerParams(
    dimension_semantics=("parallel", "parallel"),
    vmem_limit_bytes=32 * 1024 * 1024,   # safe on v5e/v6e/v7x
)


# ---------------------------------------------------------------------------
# Fused kernel: first layer -> all residual blocks -> last layer, one call.
# Tiles are (C, L): channels on sublanes, length on lanes (lane-dense stores).
# ---------------------------------------------------------------------------
def _make_fused_kernel(k, d_rates, cin, d_model, d_f, n_output,
                       l_tile, halo_cols, has_prev):
    """consts layouts:
      first consts (d_model, 3): [bias, bn_scale, bn_shift]
      block consts (n_blocks, cmax, 9):
        0:scale1 1:shift1 2:bias1 | 3:scale2 4:shift2 5:bias2 | 6:scale3 7:shift3 8:bias3
    """
    pads = tuple((k - 1) * d for d in d_rates)
    H = sum(pads)                 # total causal receptive field (left context)
    W = l_tile + H                # working window width
    n_blocks = len(d_rates)
    f32 = jnp.float32

    def kernel(*refs):
        if has_prev:
            (xc_ref, xp_ref, fw_ref, fc_ref, bc_ref,
             w1_ref, w2_ref, w3_ref, lw_ref, lb_ref, o_ref) = refs
        else:
            (xc_ref, fw_ref, fc_ref, bc_ref,
             w1_ref, w2_ref, w3_ref, lw_ref, lb_ref, o_ref) = refs
            xp_ref = None

        x = xc_ref[0]                                          # (cin, TL) f32
        valid = None
        if H > 0:
            if has_prev:
                halo = xp_ref[0][:, halo_cols - H:]            # prev-tile tail
            else:
                halo = jnp.zeros((cin, H), x.dtype)
            x = jnp.concatenate([halo, x], axis=1)             # (cin, W)
            # Global position of each window column; positions < 0 are the
            # causal zero-pad region (only non-trivial on the first L tile).
            pos = (pl.program_id(0) * l_tile - H
                   + lax.broadcasted_iota(jnp.int32, (1, W), 1))
            valid = pos >= 0                                   # (1, W) bool

        # ---- first layer: Conv1d(1x1)+bias -> ReLU -> BN (folded) ---------
        h = jnp.dot(fw_ref[...], x.astype(ACT_DTYPE),
                    preferred_element_type=f32)                # (d_model, W)
        h = jnp.maximum(h + fc_ref[:, 0:1], 0.0)
        a = h * fc_ref[:, 1:2] + fc_ref[:, 2:3]                # f32, VMEM-resident

        # ---- residual bottleneck blocks (unrolled, weights resident) ------
        for i in range(n_blocks):
            d = d_rates[i]
            pad = pads[i]
            c = bc_ref[i]                                      # (cmax, 9) f32

            # unit 1: BN -> ReLU -> 1x1 conv
            h1 = jnp.maximum(a * c[:d_model, 0:1] + c[:d_model, 1:2],
                             0.0).astype(ACT_DTYPE)
            u1 = jnp.dot(w1_ref[i], h1, preferred_element_type=f32)
            u1 = u1 + c[:d_f, 2:3]                             # (d_f, W)

            # unit 2: BN -> ReLU -> causal pad -> dilated conv
            h2 = jnp.maximum(u1 * c[:d_f, 3:4] + c[:d_f, 4:5], 0.0)
            if pad > 0:
                h2 = jnp.where(valid, h2, 0.0)   # causal zeroing (tile 0 only live)
            h2 = h2.astype(ACT_DTYPE)
            if k > 1:
                # collapse k taps into one MXU matmul (K = k*d_f); the first
                # `pad` output columns use window-local zero padding and are
                # never consumed downstream.
                h2e = jnp.concatenate(
                    [jnp.zeros((d_f, pad), h2.dtype), h2], axis=1)     # (d_f, W+pad)
                h2s = jnp.concatenate(
                    [h2e[:, j * d:j * d + W] for j in range(k)], axis=0)  # (k*d_f, W)
            else:
                h2s = h2
            u2 = jnp.dot(w2_ref[i], h2s, preferred_element_type=f32)
            u2 = u2 + c[:d_f, 5:6]                             # (d_f, W)

            # unit 3: BN -> ReLU -> 1x1 conv
            h3 = jnp.maximum(u2 * c[:d_f, 6:7] + c[:d_f, 7:8],
                             0.0).astype(ACT_DTYPE)
            u3 = jnp.dot(w3_ref[i], h3, preferred_element_type=f32)
            u3 = u3 + c[:d_model, 8:9]                         # (d_model, W)

            # residual add (stays f32, stays in VMEM)
            a = a + u3

        # ---- last layer: Conv1d(1x1)+bias ----------------------------------
        out = jnp.dot(lw_ref[...], a.astype(ACT_DTYPE),
                      preferred_element_type=f32) + lb_ref[...]
        if H > 0:
            out = out[:, H:]                                   # drop halo columns
        o_ref[0] = out.astype(o_ref.dtype)

    return kernel


def _const_spec(arr):
    """Full-array BlockSpec with a constant index map (weights stay resident)."""
    zeros = (0,) * arr.ndim
    return pl.BlockSpec(arr.shape, lambda l, b: zeros)


def tcn_forward(x, kparams, *, k, d_rates, l_tile=None):
    """Full TCN forward.  x: (B, C_in, L) f32 in PyTorch NCL layout."""
    B, cin, L = x.shape
    if l_tile is None:
        l_tile = L if L <= 2048 else 2048
    Lp = -(-L // l_tile) * l_tile
    assert l_tile == Lp or l_tile % 128 == 0, \
        "l_tile must be a multiple of 128 (or cover the whole length)"
    H = sum((k - 1) * d for d in d_rates)
    n_l = Lp // l_tile
    if n_l > 1:
        assert H <= l_tile, "total causal receptive field must fit in one L tile"
    if Lp != L:  # right-pad; causal convs never read rightward, sliced off at end
        x = jnp.pad(x, ((0, 0), (0, 0), (0, Lp - L)))

    d_model = kparams["first"]["w"].shape[0]
    d_f = kparams["w1s"].shape[1]
    n_output = kparams["last"]["w"].shape[0]

    has_prev = (H > 0) and (n_l > 1)
    if has_prev:
        halo_cols = min(l_tile, 128 * (-(-H // 128)))   # small 128-aligned halo
        if l_tile % halo_cols:
            halo_cols = l_tile                          # rare fallback
    else:
        halo_cols = 0

    kernel = _make_fused_kernel(k, tuple(d_rates), cin, d_model, d_f,
                                n_output, l_tile, halo_cols, has_prev)

    # Grid: L-major so megacore/parallel sharding has work even when B == 1.
    grid = (n_l, B)
    in_specs = [pl.BlockSpec((1, cin, l_tile), lambda l, b: (b, 0, l))]
    args = [x]
    if has_prev:
        r = l_tile // halo_cols
        in_specs.append(pl.BlockSpec(
            (1, cin, halo_cols),
            lambda l, b: (b, 0, jnp.maximum(l * r - 1, 0))))
        args.append(x)

    weight_args = [
        kparams["first"]["w"], kparams["first"]["consts"],
        kparams["bconsts"], kparams["w1s"], kparams["w2s"], kparams["w3s"],
        kparams["last"]["w"], kparams["last"]["b"],
    ]
    in_specs += [_const_spec(a) for a in weight_args]
    args += weight_args

    out = pl.pallas_call(
        kernel,
        out_shape=jax.ShapeDtypeStruct((B, n_output, Lp), jnp.float32),
        grid=grid,
        in_specs=in_specs,
        out_specs=pl.BlockSpec((1, n_output, l_tile), lambda l, b: (b, 0, l)),
        compiler_params=_COMPILER_PARAMS,
    )(*args)
    return out[:, :, :L]


# ---------------------------------------------------------------------------
# Parameters: raw (PyTorch-like) init, host-side folding/packing, reference
# ---------------------------------------------------------------------------
def init_params(key, input_size, n_output, n_blocks, d_model, d_f, k, max_d_rate):
    keys = iter(jax.random.split(key, 8 + 18 * n_blocks))

    def conv(cout, cin, ksz):
        lim = 1.0 / math.sqrt(cin * ksz)
        w = jax.random.uniform(next(keys), (cout, cin, ksz), jnp.float32, -lim, lim)
        b = jax.random.uniform(next(keys), (cout,), jnp.float32, -lim, lim)
        return w, b

    def bn(c):
        return {
            "gamma": jax.random.uniform(next(keys), (c,), jnp.float32, 0.5, 1.5),
            "beta":  jax.random.uniform(next(keys), (c,), jnp.float32, -0.1, 0.1),
            "mean":  jax.random.uniform(next(keys), (c,), jnp.float32, -0.1, 0.1),
            "var":   jax.random.uniform(next(keys), (c,), jnp.float32, 0.5, 1.5),
        }

    w, b = conv(d_model, input_size, 1)
    params = {"first": {"w": w, "b": b, "bn": bn(d_model)}}

    # matches PyTorch: int(2 ** (i % (np.log2(max_d_rate) + 1)))  (float period)
    period = math.log2(max_d_rate) + 1.0
    blocks = []
    for i in range(n_blocks):
        d_rate = int(2 ** (i % period))
        w1, b1 = conv(d_f, d_model, 1)
        w2, b2 = conv(d_f, d_f, k)
        w3, b3 = conv(d_model, d_f, 1)
        blocks.append({
            "d_rate": d_rate,
            "u1": {"w": w1, "b": b1, "bn": bn(d_model)},
            "u2": {"w": w2, "b": b2, "bn": bn(d_f)},
            "u3": {"w": w3, "b": b3, "bn": bn(d_f)},
        })
    params["blocks"] = blocks

    w, b = conv(n_output, d_model, 1)
    params["last"] = {"w": w, "b": b}
    return params


def _fold_bn(bn, eps=EPS):
    scale = bn["gamma"] * jax.lax.rsqrt(bn["var"] + eps)
    shift = bn["beta"] - bn["mean"] * scale
    return scale, shift


def fold_params(raw, eps=EPS, dtype=ACT_DTYPE):
    """Fold BN into (scale, shift), stack per-block weights, cast to bf16."""
    d_model = raw["first"]["w"].shape[0]
    s, t = _fold_bn(raw["first"]["bn"], eps)
    out = {"first": {
        "w": raw["first"]["w"][:, :, 0].astype(dtype),
        "consts": jnp.stack([raw["first"]["b"], s, t], axis=1).astype(jnp.float32),
    }}

    bconsts, w1s, w2s, w3s = [], [], [], []
    for bp in raw["blocks"]:
        d_f = bp["u1"]["w"].shape[0]
        cmax = max(d_model, d_f)
        s1, t1 = _fold_bn(bp["u1"]["bn"], eps)
        s2, t2 = _fold_bn(bp["u2"]["bn"], eps)
        s3, t3 = _fold_bn(bp["u3"]["bn"], eps)

        def padc(v):
            return jnp.pad(v, (0, cmax - v.shape[0]))

        bconsts.append(jnp.stack([
            padc(s1), padc(t1), padc(bp["u1"]["b"]),
            padc(s2), padc(t2), padc(bp["u2"]["b"]),
            padc(s3), padc(t3), padc(bp["u3"]["b"]),
        ], axis=1).astype(jnp.float32))                        # (cmax, 9)

        w2 = bp["u2"]["w"]                                     # (d_f, d_f, k)
        w1s.append(bp["u1"]["w"][:, :, 0].astype(dtype))                       # (d_f, d_model)
        w2s.append(jnp.transpose(w2, (0, 2, 1)).reshape(w2.shape[0], -1).astype(dtype))  # (d_f, k*d_f)
        w3s.append(bp["u3"]["w"][:, :, 0].astype(dtype))                       # (d_model, d_f)

    out["bconsts"] = jnp.stack(bconsts)   # (n_blocks, cmax, 9) f32
    out["w1s"] = jnp.stack(w1s)           # (n_blocks, d_f, d_model) bf16
    out["w2s"] = jnp.stack(w2s)           # (n_blocks, d_f, k*d_f)   bf16
    out["w3s"] = jnp.stack(w3s)           # (n_blocks, d_model, d_f) bf16
    out["last"] = {
        "w": raw["last"]["w"][:, :, 0].astype(dtype),
        "b": raw["last"]["b"][:, None].astype(jnp.float32),
    }
    return out


def tcn_reference(x, raw, k, eps=EPS, dtype=ACT_DTYPE):
    """Pure-JAX reference mirroring the kernel's precision choices
    (bf16 matmul operands, f32 accumulation, f32 residual chain)."""
    f32 = jnp.float32

    def fold3(bn):
        s, t = _fold_bn(bn, eps)
        return s[None, :, None], t[None, :, None]

    def conv1x1(h_bf, w, b):
        out = jnp.einsum("oc,bcl->bol", w[:, :, 0].astype(dtype), h_bf,
                         preferred_element_type=f32)
        return out + b[None, :, None]

    B, _, L = x.shape
    s, t = fold3(raw["first"]["bn"])
    h = jnp.maximum(conv1x1(x.astype(dtype), raw["first"]["w"], raw["first"]["b"]), 0.0)
    a = h * s + t                                        # f32

    for bp in raw["blocks"]:
        d = bp["d_rate"]
        pad = (k - 1) * d
        s1, t1 = fold3(bp["u1"]["bn"])
        s2, t2 = fold3(bp["u2"]["bn"])
        s3, t3 = fold3(bp["u3"]["bn"])
        h1 = jnp.maximum(a * s1 + t1, 0.0).astype(dtype)
        u1 = conv1x1(h1, bp["u1"]["w"], bp["u1"]["b"])
        h2 = jnp.maximum(u1 * s2 + t2, 0.0).astype(dtype)
        h2p = jnp.pad(h2, ((0, 0), (0, 0), (pad, 0)))
        u2 = sum(jnp.einsum("oc,bcl->bol", bp["u2"]["w"][:, :, j].astype(dtype),
                            h2p[:, :, j * d:j * d + L], preferred_element_type=f32)
                 for j in range(k)) + bp["u2"]["b"][None, :, None]
        h3 = jnp.maximum(u2 * s3 + t3, 0.0).astype(dtype)
        u3 = conv1x1(h3, bp["u3"]["w"], bp["u3"]["b"])
        a = a + u3

    return conv1x1(a.astype(dtype), raw["last"]["w"], raw["last"]["b"])


# ---------------------------------------------------------------------------
if __name__ == "__main__":
    input_size, n_output, n_blocks = 4, 8, 2
    d_model, d_f, k, max_d_rate = 32, 16, 3, 4

    key = jax.random.PRNGKey(0)
    pkey, xkey, xkey2 = jax.random.split(key, 3)
    raw = init_params(pkey, input_size, n_output, n_blocks,
                      d_model, d_f, k, max_d_rate)
    kparams = fold_params(raw)
    d_rates = tuple(bp["d_rate"] for bp in raw["blocks"])

    fwd = jax.jit(tcn_forward, static_argnames=("k", "d_rates", "l_tile"))

    # --- small single-tile run (B=2, C=4, L=16), NCL layout like PyTorch ---
    B, L = 2, 16
    x = jax.random.normal(xkey, (B, input_size, L), jnp.float32)
    out = jax.block_until_ready(fwd(x, kparams, k=k, d_rates=d_rates, l_tile=None))
    ref = jax.block_until_ready(tcn_reference(x, raw, k))
    assert out.shape == (B, n_output, L), out.shape
    assert bool(jnp.all(jnp.isfinite(out)))
    err = float(jnp.max(jnp.abs(out - ref)))
    assert err < 1e-2, f"single-tile mismatch vs reference: {err}"

    # --- multi-tile run exercising L-tiling + causal halo (L=384, tile=128) ---
    L2 = 384
    x2 = jax.random.normal(xkey2, (B, input_size, L2), jnp.float32)
    out2 = jax.block_until_ready(fwd(x2, kparams, k=k, d_rates=d_rates, l_tile=128))
    ref2 = jax.block_until_ready(tcn_reference(x2, raw, k))
    assert out2.shape == (B, n_output, L2), out2.shape
    err2 = float(jnp.max(jnp.abs(out2 - ref2)))
    assert err2 < 1e-2, f"multi-tile mismatch vs reference: {err2}"

    print("KERNEL_OK")
</pallas_src>

<mosaic_0001>
module attributes {stable_mosaic.version = 11 : i64} {
  func.func @kernel(%arg0: i32, %arg1: i32, %arg2: memref<1x4x16xf32, #tpu.memory_space<vmem>>, %arg3: memref<32x4xbf16, #tpu.memory_space<vmem>>, %arg4: memref<32x3xf32, #tpu.memory_space<vmem>>, %arg5: memref<2x32x9xf32, #tpu.memory_space<vmem>>, %arg6: memref<2x16x32xbf16, #tpu.memory_space<vmem>>, %arg7: memref<2x16x48xbf16, #tpu.memory_space<vmem>>, %arg8: memref<2x32x16xbf16, #tpu.memory_space<vmem>>, %arg9: memref<8x32xbf16, #tpu.memory_space<vmem>>, %arg10: memref<8x1xf32, #tpu.memory_space<vmem>>, %arg11: memref<1x8x16xf32, #tpu.memory_space<vmem>>) attributes {dimension_semantics = [#tpu.dimension_semantics<parallel>, #tpu.dimension_semantics<parallel>], iteration_bounds = array<i64: 1, 2>, scalar_prefetch = 0 : i64, scratch_operands = 0 : i64, tpu.core_type = #tpu.core_type<tc>, window_params = [{transform_indices = @transform_0, window_bounds = array<i64: 1, 4, 16>}, {pipeline_mode = #tpu.pipeline_mode<synchronous>, transform_indices = @transform_1, window_bounds = array<i64: 32, 4>}, {pipeline_mode = #tpu.pipeline_mode<synchronous>, transform_indices = @transform_2, window_bounds = array<i64: 32, 3>}, {pipeline_mode = #tpu.pipeline_mode<synchronous>, transform_indices = @transform_3, window_bounds = array<i64: 2, 32, 9>}, {pipeline_mode = #tpu.pipeline_mode<synchronous>, transform_indices = @transform_4, window_bounds = array<i64: 2, 16, 32>}, {pipeline_mode = #tpu.pipeline_mode<synchronous>, transform_indices = @transform_5, window_bounds = array<i64: 2, 16, 48>}, {pipeline_mode = #tpu.pipeline_mode<synchronous>, transform_indices = @transform_6, window_bounds = array<i64: 2, 32, 16>}, {pipeline_mode = #tpu.pipeline_mode<synchronous>, transform_indices = @transform_7, window_bounds = array<i64: 8, 32>}, {pipeline_mode = #tpu.pipeline_mode<synchronous>, transform_indices = @transform_8, window_bounds = array<i64: 8, 1>}, {transform_indices = @transform_9, window_bounds = array<i64: 1, 8, 16>}]} {
    %c0 = arith.constant 0 : index
    %c0_0 = arith.constant 0 : index
    %c0_1 = arith.constant 0 : index
    %0 = vector.load %arg2[%c0, %c0_0, %c0_1] : memref<1x4x16xf32, #tpu.memory_space<vmem>>, vector<1x4x16xf32>
    %1 = vector.shape_cast %0 : vector<1x4x16xf32> to vector<4x16xf32>
    %cst = arith.constant 0.000000e+00 : f32
    %2 = vector.broadcast %cst : f32 to vector<4x6xf32>
    %3 = tpu.concatenate %2, %1 in 1 : vector<4x6xf32>, vector<4x16xf32> -> vector<4x22xf32>
    %c16_i32 = arith.constant 16 : i32
    %4 = arith.muli %arg0, %c16_i32 : i32
    %c6_i32 = arith.constant 6 : i32
    %5 = arith.subi %4, %c6_i32 : i32
    %6 = tpu.iota {dimensions = array<i32: 1>} : vector<1x22xi32>
    %7 = vector.broadcast %5 : i32 to vector<1x22xi32>
    %8 = arith.addi %7, %6 : vector<1x22xi32>
    %c0_i32 = arith.constant 0 : i32
    %9 = vector.broadcast %c0_i32 : i32 to vector<1x22xi32>
    %10 = arith.cmpi sge, %8, %9 : vector<1x22xi32>
    %c0_2 = arith.constant 0 : index
    %c0_3 = arith.constant 0 : index
    %11 = vector.load %arg3[%c0_2, %c0_3] : memref<32x4xbf16, #tpu.memory_space<vmem>>, vector<32x4xbf16>
    %12 = arith.truncf %3 : vector<4x22xf32> to vector<4x22xbf16>
    %cst_4 = arith.constant dense<0.000000e+00> : vector<32x22xf32>
    %13 = tpu.matmul %11, %12, %cst_4 {dimension_numbers = #tpu.dot_dimension_numbers<[1], [0], [0], [1], [0, 0, 1, 1], [], []>} : vector<32x4xbf16>, vector<4x22xbf16>, vector<32x22xf32> -> vector<32x22xf32>
    %c0_5 = arith.constant 0 : index
    %c0_6 = arith.constant 0 : index
    %14 = vector.load %arg4[%c0_5, %c0_6] : memref<32x3xf32, #tpu.memory_space<vmem>>, vector<32x1xf32>
    %15 = vector.broadcast %14 : vector<32x1xf32> to vector<32x22xf32>
    %16 = arith.addf %13, %15 : vector<32x22xf32>
    %cst_7 = arith.constant 0.000000e+00 : f32
    %17 = vector.broadcast %cst_7 : f32 to vector<32x22xf32>
    %18 = arith.maximumf %16, %17 : vector<32x22xf32>
    %c0_8 = arith.constant 0 : index
    %c1 = arith.constant 1 : index
    %19 = vector.load %arg4[%c0_8, %c1] : memref<32x3xf32, #tpu.memory_space<vmem>>, vector<32x1xf32>
    %20 = vector.broadcast %19 : vector<32x1xf32> to vector<32x22xf32>
    %21 = arith.mulf %18, %20 : vector<32x22xf32>
    %c0_9 = arith.constant 0 : index
    %c2 = arith.constant 2 : index
    %22 = vector.load %arg4[%c0_9, %c2] : memref<32x3xf32, #tpu.memory_space<vmem>>, vector<32x1xf32>
    %23 = vector.broadcast %22 : vector<32x1xf32> to vector<32x22xf32>
    %24 = arith.addf %21, %23 : vector<32x22xf32>
    %c0_10 = arith.constant 0 : index
    %c0_11 = arith.constant 0 : index
    %c0_12 = arith.constant 0 : index
    %25 = vector.load %arg5[%c0_10, %c0_11, %c0_12] : memref<2x32x9xf32, #tpu.memory_space<vmem>>, vector<1x32x9xf32>
    %26 = vector.shape_cast %25 : vector<1x32x9xf32> to vector<32x9xf32>
    %27 = vector.extract_strided_slice %26 {offsets = [0, 0], sizes = [32, 1], strides = [1, 1]} : vector<32x9xf32> to vector<32x1xf32>
    %28 = vector.broadcast %27 : vector<32x1xf32> to vector<32x22xf32>
    %29 = arith.mulf %24, %28 : vector<32x22xf32>
    %30 = vector.extract_strided_slice %26 {offsets = [0, 1], sizes = [32, 1], strides = [1, 1]} : vector<32x9xf32> to vector<32x1xf32>
    %31 = vector.broadcast %30 : vector<32x1xf32> to vector<32x22xf32>
    %32 = arith.addf %29, %31 : vector<32x22xf32>
    %cst_13 = arith.constant 0.000000e+00 : f32
    %33 = vector.broadcast %cst_13 : f32 to vector<32x22xf32>
    %34 = arith.maximumf %32, %33 : vector<32x22xf32>
    %35 = arith.truncf %34 : vector<32x22xf32> to vector<32x22xbf16>
    %c0_14 = arith.constant 0 : index
    %c0_15 = arith.constant 0 : index
    %c0_16 = arith.constant 0 : index
    %36 = vector.load %arg6[%c0_14, %c0_15, %c0_16] : memref<2x16x32xbf16, #tpu.memory_space<vmem>>, vector<1x16x32xbf16>
    %37 = vector.shape_cast %36 : vector<1x16x32xbf16> to vector<16x32xbf16>
    %cst_17 = arith.constant dense<0.000000e+00> : vector<16x22xf32>
    %38 = tpu.matmul %37, %35, %cst_17 {dimension_numbers = #tpu.dot_dimension_numbers<[1], [0], [0], [1], [0, 0, 1, 1], [], []>} : vector<16x32xbf16>, vector<32x22xbf16>, vector<16x22xf32> -> vector<16x22xf32>
    %39 = vector.extract_strided_slice %26 {offsets = [0, 2], sizes = [16, 1], strides = [1, 1]} : vector<32x9xf32> to vector<16x1xf32>
    %40 = vector.broadcast %39 : vector<16x1xf32> to vector<16x22xf32>
    %41 = arith.addf %38, %40 : vector<16x22xf32>
    %42 = vector.extract_strided_slice %26 {offsets = [0, 3], sizes = [16, 1], strides = [1, 1]} : vector<32x9xf32> to vector<16x1xf32>
    %43 = vector.broadcast %42 : vector<16x1xf32> to vector<16x22xf32>
    %44 = arith.mulf %41, %43 : vector<16x22xf32>
    %45 = vector.extract_strided_slice %26 {offsets = [0, 4], sizes = [16, 1], strides = [1, 1]} : vector<32x9xf32> to vector<16x1xf32>
    %46 = vector.broadcast %45 : vector<16x1xf32> to vector<16x22xf32>
    %47 = arith.addf %44, %46 : vector<16x22xf32>
    %cst_18 = arith.constant 0.000000e+00 : f32
    %48 = vector.broadcast %cst_18 : f32 to vector<16x22xf32>
    %49 = arith.maximumf %47, %48 : vector<16x22xf32>
    %cst_19 = arith.constant 0.000000e+00 : f32
    %50 = vector.shape_cast %10 : vector<1x22xi1> to vector<1x22xi1>
    %51 = vector.broadcast %50 : vector<1x22xi1> to vector<16x22xi1>
    %52 = vector.broadcast %cst_19 : f32 to vector<16x22xf32>
    %53 = arith.select %51, %49, %52 : vector<16x22xi1>, vector<16x22xf32>
    %54 = arith.truncf %53 : vector<16x22xf32> to vector<16x22xbf16>
    %cst_20 = arith.constant 0.000000e+00 : bf16
    %55 = vector.broadcast %cst_20 : bf16 to vector<16x2xbf16>
    %56 = tpu.concatenate %55, %54 in 1 : vector<16x2xbf16>, vector<16x22xbf16> -> vector<16x24xbf16>
    %57 = vector.extract_strided_slice %56 {offsets = [0, 0], sizes = [16, 22], strides = [1, 1]} : vector<16x24xbf16> to vector<16x22xbf16>
    %58 = vector.extract_strided_slice %56 {offsets = [0, 1], sizes = [16, 22], strides = [1, 1]} : vector<16x24xbf16> to vector<16x22xbf16>
    %59 = vector.extract_strided_slice %56 {offsets = [0, 2], sizes = [16, 22], strides = [1, 1]} : vector<16x24xbf16> to vector<16x22xbf16>
    %60 = tpu.concatenate %57, %58, %59 in 0 : vector<16x22xbf16>, vector<16x22xbf16>, vector<16x22xbf16> -> vector<48x22xbf16>
    %c0_21 = arith.constant 0 : index
    %c0_22 = arith.constant 0 : index
    %c0_23 = arith.constant 0 : index
    %61 = vector.load %arg7[%c0_21, %c0_22, %c0_23] : memref<2x16x48xbf16, #tpu.memory_space<vmem>>, vector<1x16x48xbf16>
    %62 = vector.shape_cast %61 : vector<1x16x48xbf16> to vector<16x48xbf16>
    %cst_24 = arith.constant dense<0.000000e+00> : vector<16x22xf32>
    %63 = tpu.matmul %62, %60, %cst_24 {dimension_numbers = #tpu.dot_dimension_numbers<[1], [0], [0], [1], [0, 0, 1, 1], [], []>} : vector<16x48xbf16>, vector<48x22xbf16>, vector<16x22xf32> -> vector<16x22xf32>
    %64 = vector.extract_strided_slice %26 {offsets = [0, 5], sizes = [16, 1], strides = [1, 1]} : vector<32x9xf32> to vector<16x1xf32>
    %65 = vector.broadcast %64 : vector<16x1xf32> to vector<16x22xf32>
    %66 = arith.addf %63, %65 : vector<16x22xf32>
    %67 = vector.extract_strided_slice %26 {offsets = [0, 6], sizes = [16, 1], strides = [1, 1]} : vector<32x9xf32> to vector<16x1xf32>
    %68 = vector.broadcast %67 : vector<16x1xf32> to vector<16x22xf32>
    %69 = arith.mulf %66, %68 : vector<16x22xf32>
    %70 = vector.extract_strided_slice %26 {offsets = [0, 7], sizes = [16, 1], strides = [1, 1]} : vector<32x9xf32> to vector<16x1xf32>
    %71 = vector.broadcast %70 : vector<16x1xf32> to vector<16x22xf32>
    %72 = arith.addf %69, %71 : vector<16x22xf32>
    %cst_25 = arith.constant 0.000000e+00 : f32
    %73 = vector.broadcast %cst_25 : f32 to vector<16x22xf32>
    %74 = arith.maximumf %72, %73 : vector<16x22xf32>
    %75 = arith.truncf %74 : vector<16x22xf32> to vector<16x22xbf16>
    %c0_26 = arith.constant 0 : index
    %c0_27 = arith.constant 0 : index
    %c0_28 = arith.constant 0 : index
    %76 = vector.load %arg8[%c0_26, %c0_27, %c0_28] : memref<2x32x16xbf16, #tpu.memory_space<vmem>>, vector<1x32x16xbf16>
    %77 = vector.shape_cast %76 : vector<1x32x16xbf16> to vector<32x16xbf16>
    %cst_29 = arith.constant dense<0.000000e+00> : vector<32x22xf32>
    %78 = tpu.matmul %77, %75, %cst_29 {dimension_numbers = #tpu.dot_dimension_numbers<[1], [0], [0], [1], [0, 0, 1, 1], [], []>} : vector<32x16xbf16>, vector<16x22xbf16>, vector<32x22xf32> -> vector<32x22xf32>
    %79 = vector.extract_strided_slice %26 {offsets = [0, 8], sizes = [32, 1], strides = [1, 1]} : vector<32x9xf32> to vector<32x1xf32>
    %80 = vector.broadcast %79 : vector<32x1xf32> to vector<32x22xf32>
    %81 = arith.addf %78, %80 : vector<32x22xf32>
    %82 = arith.addf %24, %81 : vector<32x22xf32>
    %c1_30 = arith.constant 1 : index
    %c0_31 = arith.constant 0 : index
    %c0_32 = arith.constant 0 : index
    %83 = vector.load %arg5[%c1_30, %c0_31, %c0_32] : memref<2x32x9xf32, #tpu.memory_space<vmem>>, vector<1x32x9xf32>
    %84 = vector.shape_cast %83 : vector<1x32x9xf32> to vector<32x9xf32>
    %85 = vector.extract_strided_slice %84 {offsets = [0, 0], sizes = [32, 1], strides = [1, 1]} : vector<32x9xf32> to vector<32x1xf32>
    %86 = vector.broadcast %85 : vector<32x1xf32> to vector<32x22xf32>
    %87 = arith.mulf %82, %86 : vector<32x22xf32>
    %88 = vector.extract_strided_slice %84 {offsets = [0, 1], sizes = [32, 1], strides = [1, 1]} : vector<32x9xf32> to vector<32x1xf32>
    %89 = vector.broadcast %88 : vector<32x1xf32> to vector<32x22xf32>
    %90 = arith.addf %87, %89 : vector<32x22xf32>
    %cst_33 = arith.constant 0.000000e+00 : f32
    %91 = vector.broadcast %cst_33 : f32 to vector<32x22xf32>
    %92 = arith.maximumf %90, %91 : vector<32x22xf32>
    %93 = arith.truncf %92 : vector<32x22xf32> to vector<32x22xbf16>
    %c1_34 = arith.constant 1 : index
    %c0_35 = arith.constant 0 : index
    %c0_36 = arith.constant 0 : index
    %94 = vector.load %arg6[%c1_34, %c0_35, %c0_36] : memref<2x16x32xbf16, #tpu.memory_space<vmem>>, vector<1x16x32xbf16>
    %95 = vector.shape_cast %94 : vector<1x16x32xbf16> to vector<16x32xbf16>
    %cst_37 = arith.constant dense<0.000000e+00> : vector<16x22xf32>
    %96 = tpu.matmul %95, %93, %cst_37 {dimension_numbers = #tpu.dot_dimension_numbers<[1], [0], [0], [1], [0, 0, 1, 1], [], []>} : vector<16x32xbf16>, vector<32x22xbf16>, vector<16x22xf32> -> vector<16x22xf32>
    %97 = vector.extract_strided_slice %84 {offsets = [0, 2], sizes = [16, 1], strides = [1, 1]} : vector<32x9xf32> to vector<16x1xf32>
    %98 = vector.broadcast %97 : vector<16x1xf32> to vector<16x22xf32>
    %99 = arith.addf %96, %98 : vector<16x22xf32>
    %100 = vector.extract_strided_slice %84 {offsets = [0, 3], sizes = [16, 1], strides = [1, 1]} : vector<32x9xf32> to vector<16x1xf32>
    %101 = vector.broadcast %100 : vector<16x1xf32> to vector<16x22xf32>
    %102 = arith.mulf %99, %101 : vector<16x22xf32>
    %103 = vector.extract_strided_slice %84 {offsets = [0, 4], sizes = [16, 1], strides = [1, 1]} : vector<32x9xf32> to vector<16x1xf32>
    %104 = vector.broadcast %103 : vector<16x1xf32> to vector<16x22xf32>
    %105 = arith.addf %102, %104 : vector<16x22xf32>
    %cst_38 = arith.constant 0.000000e+00 : f32
    %106 = vector.broadcast %cst_38 : f32 to vector<16x22xf32>
    %107 = arith.maximumf %105, %106 : vector<16x22xf32>
    %cst_39 = arith.constant 0.000000e+00 : f32
    %108 = vector.shape_cast %10 : vector<1x22xi1> to vector<1x22xi1>
    %109 = vector.broadcast %108 : vector<1x22xi1> to vector<16x22xi1>
    %110 = vector.broadcast %cst_39 : f32 to vector<16x22xf32>
    %111 = arith.select %109, %107, %110 : vector<16x22xi1>, vector<16x22xf32>
    %112 = arith.truncf %111 : vector<16x22xf32> to vector<16x22xbf16>
    %cst_40 = arith.constant 0.000000e+00 : bf16
    %113 = vector.broadcast %cst_40 : bf16 to vector<16x4xbf16>
    %114 = tpu.concatenate %113, %112 in 1 : vector<16x4xbf16>, vector<16x22xbf16> -> vector<16x26xbf16>
    %115 = vector.extract_strided_slice %114 {offsets = [0, 0], sizes = [16, 22], strides = [1, 1]} : vector<16x26xbf16> to vector<16x22xbf16>
    %116 = vector.extract_strided_slice %114 {offsets = [0, 2], sizes = [16, 22], strides = [1, 1]} : vector<16x26xbf16> to vector<16x22xbf16>
    %117 = vector.extract_strided_slice %114 {offsets = [0, 4], sizes = [16, 22], strides = [1, 1]} : vector<16x26xbf16> to vector<16x22xbf16>
    %118 = tpu.concatenate %115, %116, %117 in 0 : vector<16x22xbf16>, vector<16x22xbf16>, vector<16x22xbf16> -> vector<48x22xbf16>
    %c1_41 = arith.constant 1 : index
    %c0_42 = arith.constant 0 : index
    %c0_43 = arith.constant 0 : index
    %119 = vector.load %arg7[%c1_41, %c0_42, %c0_43] : memref<2x16x48xbf16, #tpu.memory_space<vmem>>, vector<1x16x48xbf16>
    %120 = vector.shape_cast %119 : vector<1x16x48xbf16> to vector<16x48xbf16>
    %cst_44 = arith.constant dense<0.000000e+00> : vector<16x22xf32>
    %121 = tpu.matmul %120, %118, %cst_44 {dimension_numbers = #tpu.dot_dimension_numbers<[1], [0], [0], [1], [0, 0, 1, 1], [], []>} : vector<16x48xbf16>, vector<48x22xbf16>, vector<16x22xf32> -> vector<16x22xf32>
    %122 = vector.extract_strided_slice %84 {offsets = [0, 5], sizes = [16, 1], strides = [1, 1]} : vector<32x9xf32> to vector<16x1xf32>
    %123 = vector.broadcast %122 : vector<16x1xf32> to vector<16x22xf32>
    %124 = arith.addf %121, %123 : vector<16x22xf32>
    %125 = vector.extract_strided_slice %84 {offsets = [0, 6], sizes = [16, 1], strides = [1, 1]} : vector<32x9xf32> to vector<16x1xf32>
    %126 = vector.broadcast %125 : vector<16x1xf32> to vector<16x22xf32>
    %127 = arith.mulf %124, %126 : vector<16x22xf32>
    %128 = vector.extract_strided_slice %84 {offsets = [0, 7], sizes = [16, 1], strides = [1, 1]} : vector<32x9xf32> to vector<16x1xf32>
    %129 = vector.broadcast %128 : vector<16x1xf32> to vector<16x22xf32>
    %130 = arith.addf %127, %129 : vector<16x22xf32>
    %cst_45 = arith.constant 0.000000e+00 : f32
    %131 = vector.broadcast %cst_45 : f32 to vector<16x22xf32>
    %132 = arith.maximumf %130, %131 : vector<16x22xf32>
    %133 = arith.truncf %132 : vector<16x22xf32> to vector<16x22xbf16>
    %c1_46 = arith.constant 1 : index
    %c0_47 = arith.constant 0 : index
    %c0_48 = arith.constant 0 : index
    %134 = vector.load %arg8[%c1_46, %c0_47, %c0_48] : memref<2x32x16xbf16, #tpu.memory_space<vmem>>, vector<1x32x16xbf16>
    %135 = vector.shape_cast %134 : vector<1x32x16xbf16> to vector<32x16xbf16>
    %cst_49 = arith.constant dense<0.000000e+00> : vector<32x22xf32>
    %136 = tpu.matmul %135, %133, %cst_49 {dimension_numbers = #tpu.dot_dimension_numbers<[1], [0], [0], [1], [0, 0, 1, 1], [], []>} : vector<32x16xbf16>, vector<16x22xbf16>, vector<32x22xf32> -> vector<32x22xf32>
    %137 = vector.extract_strided_slice %84 {offsets = [0, 8], sizes = [32, 1], strides = [1, 1]} : vector<32x9xf32> to vector<32x1xf32>
    %138 = vector.broadcast %137 : vector<32x1xf32> to vector<32x22xf32>
    %139 = arith.addf %136, %138 : vector<32x22xf32>
    %140 = arith.addf %82, %139 : vector<32x22xf32>
    %c0_50 = arith.constant 0 : index
    %c0_51 = arith.constant 0 : index
    %141 = vector.load %arg9[%c0_50, %c0_51] : memref<8x32xbf16, #tpu.memory_space<vmem>>, vector<8x32xbf16>
    %142 = arith.truncf %140 : vector<32x22xf32> to vector<32x22xbf16>
    %cst_52 = arith.constant dense<0.000000e+00> : vector<8x22xf32>
    %143 = tpu.matmul %141, %142, %cst_52 {dimension_numbers = #tpu.dot_dimension_numbers<[1], [0], [0], [1], [0, 0, 1, 1], [], []>} : vector<8x32xbf16>, vector<32x22xbf16>, vector<8x22xf32> -> vector<8x22xf32>
    %c0_53 = arith.constant 0 : index
    %c0_54 = arith.constant 0 : index
    %144 = vector.load %arg10[%c0_53, %c0_54] : memref<8x1xf32, #tpu.memory_space<vmem>>, vector<8x1xf32>
    %145 = vector.broadcast %144 : vector<8x1xf32> to vector<8x22xf32>
    %146 = arith.addf %143, %145 : vector<8x22xf32>
    %147 = vector.extract_strided_slice %146 {offsets = [0, 6], sizes = [8, 16], strides = [1, 1]} : vector<8x22xf32> to vector<8x16xf32>
    %c0_55 = arith.constant 0 : index
    %c0_56 = arith.constant 0 : index
    %c0_57 = arith.constant 0 : index
    %148 = vector.load %arg11[%c0_55, %c0_56, %c0_57] : memref<1x8x16xf32, #tpu.memory_space<vmem>>, vector<1x8x16xf32>
    %149 = vector.shape_cast %148 : vector<1x8x16xf32> to vector<8x16xf32>
    %150 = vector.shape_cast %147 : vector<8x16xf32> to vector<1x8x16xf32>
    tpu.vector_store %arg11[%c0_55, %c0_56, %c0_57], %150 {strides = array<i32>} : memref<1x8x16xf32, #tpu.memory_space<vmem>>, vector<1x8x16xf32>,
    return
  }
  func.func @transform_0(%arg0: i32, %arg1: i32) -> (i32, i32, i32) {
    %c0_i32 = arith.constant 0 : i32
    %c0_i32_0 = arith.constant 0 : i32
    return %arg1, %c0_i32, %arg0 : i32, i32, i32
  }
  func.func @transform_1(%arg0: i32, %arg1: i32) -> (i32, i32) {
    %c0_i32 = arith.constant 0 : i32
    %c0_i32_0 = arith.constant 0 : i32
    %c0_i32_1 = arith.constant 0 : i32
    return %c0_i32, %c0_i32_0 : i32, i32
  }
  func.func @transform_2(%arg0: i32, %arg1: i32) -> (i32, i32) {
    %c0_i32 = arith.constant 0 : i32
    %c0_i32_0 = arith.constant 0 : i32
    %c0_i32_1 = arith.constant 0 : i32
    return %c0_i32, %c0_i32_0 : i32, i32
  }
  func.func @transform_3(%arg0: i32, %arg1: i32) -> (i32, i32, i32) {
    %c0_i32 = arith.constant 0 : i32
    %c0_i32_0 = arith.constant 0 : i32
    %c0_i32_1 = arith.constant 0 : i32
    %c0_i32_2 = arith.constant 0 : i32
    return %c0_i32, %c0_i32_0, %c0_i32_1 : i32, i32, i32
  }
  func.func @transform_4(%arg0: i32, %arg1: i32) -> (i32, i32, i32) {
    %c0_i32 = arith.constant 0 : i32
    %c0_i32_0 = arith.constant 0 : i32
    %c0_i32_1 = arith.constant 0 : i32
    %c0_i32_2 = arith.constant 0 : i32
    return %c0_i32, %c0_i32_0, %c0_i32_1 : i32, i32, i32
  }
  func.func @transform_5(%arg0: i32, %arg1: i32) -> (i32, i32, i32) {
    %c0_i32 = arith.constant 0 : i32
    %c0_i32_0 = arith.constant 0 : i32
    %c0_i32_1 = arith.constant 0 : i32
    %c0_i32_2 = arith.constant 0 : i32
    return %c0_i32, %c0_i32_0, %c0_i32_1 : i32, i32, i32
  }
  func.func @transform_6(%arg0: i32, %arg1: i32) -> (i32, i32, i32) {
    %c0_i32 = arith.constant 0 : i32
    %c0_i32_0 = arith.constant 0 : i32
    %c0_i32_1 = arith.constant 0 : i32
    %c0_i32_2 = arith.constant 0 : i32
    return %c0_i32, %c0_i32_0, %c0_i32_1 : i32, i32, i32
  }
  func.func @transform_7(%arg0: i32, %arg1: i32) -> (i32, i32) {
    %c0_i32 = arith.constant 0 : i32
    %c0_i32_0 = arith.constant 0 : i32
    %c0_i32_1 = arith.constant 0 : i32
    return %c0_i32, %c0_i32_0 : i32, i32
  }
  func.func @transform_8(%arg0: i32, %arg1: i32) -> (i32, i32) {
    %c0_i32 = arith.constant 0 : i32
    %c0_i32_0 = arith.constant 0 : i32
    %c0_i32_1 = arith.constant 0 : i32
    return %c0_i32, %c0_i32_0 : i32, i32
  }
  func.func @transform_9(%arg0: i32, %arg1: i32) -> (i32, i32, i32) {
    %c0_i32 = arith.constant 0 : i32
    %c0_i32_0 = arith.constant 0 : i32
    return %arg1, %c0_i32, %arg0 : i32, i32, i32
  }
}

</mosaic_0001>

<llo_original>
// kernel: tcn_forward.1
$region0: #{tcn_forward.1}
  #allocation0 [shape = 'u32[]', space=smem, size = 0x4, offset = 0x4, fixed_abs, tag = 'smem constant byte address 0x4 - core index']
  #allocation1 [shape = 'u32[144,128]{1,0:T(1,128)}', space=vmem, size = 0x12000, scoped, tag = 'internal scratch']
  %s0 = inlined_call_operand.vmem [shape: f32[2,4,16], index: 0, kind: input, shape index: {}]
  %s1 = inlined_call_operand.vmem [shape: bf16[32,4], index: 1, kind: input, shape index: {}]
  %s2 = inlined_call_operand.vmem [shape: f32[32,3], index: 2, kind: input, shape index: {}]
  %s3 = inlined_call_operand.vmem [shape: f32[2,32,9], index: 3, kind: input, shape index: {}]
  %s4 = inlined_call_operand.vmem [shape: bf16[2,16,32], index: 4, kind: input, shape index: {}]
  %s5 = inlined_call_operand.vmem [shape: bf16[2,16,48], index: 5, kind: input, shape index: {}]
  %s6 = inlined_call_operand.vmem [shape: bf16[2,32,16], index: 6, kind: input, shape index: {}]
  %s7 = inlined_call_operand.vmem [shape: bf16[8,32], index: 7, kind: input, shape index: {}]
  %s8 = inlined_call_operand.vmem [shape: f32[8,1], index: 8, kind: input, shape index: {}]
  %s9 = inlined_call_operand.hbm [shape: f32[2,8,16], index: 9, kind: output, shape index: {}]
  %s10 = sld [smem:[#allocation0]]
  $region69: #{tcn_forward.1} parent=0
    _
  %s12 = ssub.s32 1, %s10
  %s13 = scalar_select 0, %s12, %s10
  $region1: #{tcn_forward.1} parent=0
    #allocation2 [shape = 'u8[8192]{0}', space=vmem, size = 0x2000, scoped, tag = 'output window, operand 0']
    #allocation3 [shape = 's32[2]{0}', space=sflag, size = 0x8, scoped, tag = 'scoped memory for tcn_forward.1']
    %14 = vsyncpa [#allocation3], 0
    %s15 = scalar_lea.sflag [#allocation3], 1
    %16 = vsyncpa %s15, 0
    loop: start=0, step=1, limit=4
    $region2: #{tcn_forward.1} parent=1 // loop_pre_header
      _
    $region3: #{tcn_forward.1} parent=1 // loop_header
      %s18 = sphi 0, %s22
      %p19 = scmp.ge.s32.totalorder %s18, 4
      %s25 = sphi 0, %s37
      %s26 = sphi 0, %s33
      %s27 = sphi 0, %s25
      %s28 = sphi 0, %s26
      %s29 = sphi 0, %s27
      %s30 = sphi 0, %s28
      %s42 = sphi 0, %s44
      %s45 = sphi 0, %s42
      %s46 = sphi 0, %s45
      %s62 = sphi 0, %s46
      %s66 = sphi 0, %s66
      %s68 = sphi 0, %s66
      %s69 = sphi 0, %s68
      %s83 = sphi 0, %s69
      %s87 = sphi 0, %s87
      %s89 = sphi 0, %s87
      %s90 = sphi 0, %s89
      %s104 = sphi 0, %s90
      %s108 = sphi 0, %s108
      %s110 = sphi 0, %s108
      %s111 = sphi 0, %s110
      %s125 = sphi 0, %s111
      %s129 = sphi 0, %s129
      %s131 = sphi 0, %s129
      %s132 = sphi 0, %s131
      %s146 = sphi 0, %s132
      %s150 = sphi 0, %s150
      %s152 = sphi 0, %s150
      %s153 = sphi 0, %s152
      %s167 = sphi 0, %s153
      %s171 = sphi 0, %s171
      %s173 = sphi 0, %s171
      %s174 = sphi 0, %s173
      %s188 = sphi 0, %s174
      %s192 = sphi 0, %s192
      %s194 = sphi 0, %s192
      %s195 = sphi 0, %s194
      %s209 = sphi 0, %s195
      %s213 = sphi 0, %s213
      %s215 = sphi 0, %s213
      %s216 = sphi 0, %s215
      %s230 = sphi 0, %s216
      %s238 = sphi 0, %s240
      %s241 = sphi 0, %s238
      %s242 = sphi 0, %s241
      %s258 = sphi 0, %s242
    $region4: #{tcn_forward.1} parent=1 // loop_header_branch
      %21 = sbr.rel (%p19) target = $region8
    $region5: #{tcn_forward.1} parent=1 // loop_body
      %s23 = ssub.s32 %s18, 1
      %s24 = ssub.s32 %s18, 2
      %s31 = sadd.s32 1, %s26
      %p32 = scmp.ge.s32.totalorder %s31, 2
      %s33 = scalar_select %p32, 0, %s31
      %s34 = sadd.s32 1, %s25
      %s35 = scalar_select %p32, %s34, %s25
      %p36 = scmp.ge.s32.totalorder %s35, 1
      %s37 = scalar_select %p36, 0, %s35
      %s38 = ssub.s32 %s26, %s33
      %s39 = ssub.s32 %s25, %s37
      %s40 = sor.u32 %s38, %s39
      %p41 = scmp.eq.s32.totalorder %s40, 0
      %s43 = sadd.s32 %s42, 1
      %s44 = scalar_select %p41, %s42, %s43
      %p47 = pneg %p41
      %p48 = scmp.eq.s32.totalorder %s18, 1
      %p49 = por %p47, %p48
      %p50 = scmp.ne.s32.totalorder %s42, %s45
      %p51 = scmp.eq.s32.totalorder %s18, 0
      %p52 = por %p50, %p51
      %p53 = scmp.ne.s32.totalorder %s42, %s45
      %p54 = scmp.eq.s32.totalorder %s23, 1
      %p55 = por %p53, %p54
      %p56 = scmp.ne.s32.totalorder %s45, %s46
      %p57 = scmp.eq.s32.totalorder %s23, 0
      %p58 = por %p56, %p57
      %p59 = scmp.ne.s32.totalorder %s45, %s46
      %p60 = scmp.eq.s32.totalorder %s24, 1
      %p61 = por %p59, %p60
      %p63 = scmp.ne.s32.totalorder %s46, %s62
      %p64 = scmp.eq.s32.totalorder %s24, 0
      %p65 = por %p63, %p64
      %s67 = sadd.s32 %s66, 1
      %p70 = scmp.eq.s32.totalorder %s18, 1
      %p71 = scmp.ne.s32.totalorder %s66, %s68
      %p72 = scmp.eq.s32.totalorder %s18, 0
      %p73 = por %p71, %p72
      %p74 = scmp.ne.s32.totalorder %s66, %s68
      %p75 = scmp.eq.s32.totalorder %s23, 1
      %p76 = por %p74, %p75
      %p77 = scmp.ne.s32.totalorder %s68, %s69
      %p78 = scmp.eq.s32.totalorder %s23, 0
      %p79 = por %p77, %p78
      %p80 = scmp.ne.s32.totalorder %s68, %s69
      %p81 = scmp.eq.s32.totalorder %s24, 1
      %p82 = por %p80, %p81
      %p84 = scmp.ne.s32.totalorder %s69, %s83
      %p85 = scmp.eq.s32.totalorder %s24, 0
      %p86 = por %p84, %p85
      %s88 = sadd.s32 %s87, 1
      %p91 = scmp.eq.s32.totalorder %s18, 1
      %p92 = scmp.ne.s32.totalorder %s87, %s89
      %p93 = scmp.eq.s32.totalorder %s18, 0
      %p94 = por %p92, %p93
      %p95 = scmp.ne.s32.totalorder %s87, %s89
      %p96 = scmp.eq.s32.totalorder %s23, 1
      %p97 = por %p95, %p96
      %p98 = scmp.ne.s32.totalorder %s89, %s90
      %p99 = scmp.eq.s32.totalorder %s23, 0
      %p100 = por %p98, %p99
      %p101 = scmp.ne.s32.totalorder %s89, %s90
      %p102 = scmp.eq.s32.totalorder %s24, 1
      %p103 = por %p101, %p102
      %p105 = scmp.ne.s32.totalorder %s90, %s104
      %p106 = scmp.eq.s32.totalorder %s24, 0
      %p107 = por %p105, %p106
      %s109 = sadd.s32 %s108, 1
      %p112 = scmp.eq.s32.totalorder %s18, 1
      %p113 = scmp.ne.s32.totalorder %s108, %s110
      %p114 = scmp.eq.s32.totalorder %s18, 0
      %p115 = por %p113, %p114
      %p116 = scmp.ne.s32.totalorder %s108, %s110
      %p117 = scmp.eq.s32.totalorder %s23, 1
      %p118 = por %p116, %p117
      %p119 = scmp.ne.s32.totalorder %s110, %s111
      %p120 = scmp.eq.s32.totalorder %s23, 0
      %p121 = por %p119, %p120
      %p122 = scmp.ne.s32.totalorder %s110, %s111
      %p123 = scmp.eq.s32.totalorder %s24, 1
      %p124 = por %p122, %p123
      %p126 = scmp.ne.s32.totalorder %s111, %s125
      %p127 = scmp.eq.s32.totalorder %s24, 0
      %p128 = por %p126, %p127
      %s130 = sadd.s32 %s129, 1
      %p133 = scmp.eq.s32.totalorder %s18, 1
      %p134 = scmp.ne.s32.totalorder %s129, %s131
      %p135 = scmp.eq.s32.totalorder %s18, 0
      %p136 = por %p134, %p135
      %p137 = scmp.ne.s32.totalorder %s129, %s131
      %p138 = scmp.eq.s32.totalorder %s23, 1
      %p139 = por %p137, %p138
      %p140 = scmp.ne.s32.totalorder %s131, %s132
      %p141 = scmp.eq.s32.totalorder %s23, 0
      %p142 = por %p140, %p141
      %p143 = scmp.ne.s32.totalorder %s131, %s132
      %p144 = scmp.eq.s32.totalorder %s24, 1
      %p145 = por %p143, %p144
      %p147 = scmp.ne.s32.totalorder %s132, %s146
      %p148 = scmp.eq.s32.totalorder %s24, 0
      %p149 = por %p147, %p148
      %s151 = sadd.s32 %s150, 1
      %p154 = scmp.eq.s32.totalorder %s18, 1
      %p155 = scmp.ne.s32.totalorder %s150, %s152
      %p156 = scmp.eq.s32.totalorder %s18, 0
      %p157 = por %p155, %p156
      %p158 = scmp.ne.s32.totalorder %s150, %s152
      %p159 = scmp.eq.s32.totalorder %s23, 1
      %p160 = por %p158, %p159
      %p161 = scmp.ne.s32.totalorder %s152, %s153
      %p162 = scmp.eq.s32.totalorder %s23, 0
      %p163 = por %p161, %p162
      %p164 = scmp.ne.s32.totalorder %s152, %s153
      %p165 = scmp.eq.s32.totalorder %s24, 1
      %p166 = por %p164, %p165
      %p168 = scmp.ne.s32.totalorder %s153, %s167
      %p169 = scmp.eq.s32.totalorder %s24, 0
      %p170 = por %p168, %p169
      %s172 = sadd.s32 %s171, 1
      %p175 = scmp.eq.s32.totalorder %s18, 1
      %p176 = scmp.ne.s32.totalorder %s171, %s173
      %p177 = scmp.eq.s32.totalorder %s18, 0
      %p178 = por %p176, %p177
      %p179 = scmp.ne.s32.totalorder %s171, %s173
      %p180 = scmp.eq.s32.totalorder %s23, 1
      %p181 = por %p179, %p180
      %p182 = scmp.ne.s32.totalorder %s173, %s174
      %p183 = scmp.eq.s32.totalorder %s23, 0
      %p184 = por %p182, %p183
      %p185 = scmp.ne.s32.totalorder %s173, %s174
      %p186 = scmp.eq.s32.totalorder %s24, 1
      %p187 = por %p185, %p186
      %p189 = scmp.ne.s32.totalorder %s174, %s188
      %p190 = scmp.eq.s32.totalorder %s24, 0
      %p191 = por %p189, %p190
      %s193 = sadd.s32 %s192, 1
      %p196 = scmp.eq.s32.totalorder %s18, 1
      %p197 = scmp.ne.s32.totalorder %s192, %s194
      %p198 = scmp.eq.s32.totalorder %s18, 0
      %p199 = por %p197, %p198
      %p200 = scmp.ne.s32.totalorder %s192, %s194
      %p201 = scmp.eq.s32.totalorder %s23, 1
      %p202 = por %p200, %p201
      %p203 = scmp.ne.s32.totalorder %s194, %s195
      %p204 = scmp.eq.s32.totalorder %s23, 0
      %p205 = por %p203, %p204
      %p206 = scmp.ne.s32.totalorder %s194, %s195
      %p207 = scmp.eq.s32.totalorder %s24, 1
      %p208 = por %p206, %p207
      %p210 = scmp.ne.s32.totalorder %s195, %s209
      %p211 = scmp.eq.s32.totalorder %s24, 0
      %p212 = por %p210, %p211
      %s214 = sadd.s32 %s213, 1
      %p217 = scmp.eq.s32.totalorder %s18, 1
      %p218 = scmp.ne.s32.totalorder %s213, %s215
      %p219 = scmp.eq.s32.totalorder %s18, 0
      %p220 = por %p218, %p219
      %p221 = scmp.ne.s32.totalorder %s213, %s215
      %p222 = scmp.eq.s32.totalorder %s23, 1
      %p223 = por %p221, %p222
      %p224 = scmp.ne.s32.totalorder %s215, %s216
      %p225 = scmp.eq.s32.totalorder %s23, 0
      %p226 = por %p224, %p225
      %p227 = scmp.ne.s32.totalorder %s215, %s216
      %p228 = scmp.eq.s32.totalorder %s24, 1
      %p229 = por %p227, %p228
      %p231 = scmp.ne.s32.totalorder %s216, %s230
      %p232 = scmp.eq.s32.totalorder %s24, 0
      %p233 = por %p231, %p232
      %s234 = ssub.s32 %s26, %s33
      %s235 = ssub.s32 %s25, %s37
      %s236 = sor.u32 %s234, %s235
      %p237 = scmp.eq.s32.totalorder %s236, 0
      %s239 = sadd.s32 %s238, 1
      %s240 = scalar_select %p237, %s238, %s239
      %p243 = pneg %p237
      %p244 = scmp.eq.s32.totalorder %s18, 1
      %p245 = por %p243, %p244
      %p246 = scmp.ne.s32.totalorder %s238, %s241
      %p247 = scmp.eq.s32.totalorder %s18, 0
      %p248 = por %p246, %p247
      %p249 = scmp.ne.s32.totalorder %s238, %s241
      %p250 = scmp.eq.s32.totalorder %s23, 1
      %p251 = por %p249, %p250
      %p252 = scmp.ne.s32.totalorder %s241, %s242
      %p253 = scmp.eq.s32.totalorder %s23, 0
      %p254 = por %p252, %p253
      %p255 = scmp.ne.s32.totalorder %s241, %s242
      %p256 = scmp.eq.s32.totalorder %s24, 1
      %p257 = por %p255, %p256
      %p259 = scmp.ne.s32.totalorder %s242, %s258
      %p260 = scmp.eq.s32.totalorder %s24, 0
      %p261 = por %p259, %p260
      %p262 = scmp.le.s32.totalorder 1, %s18
      %p263 = scmp.lt.s32.totalorder %s18, 3
      %p264 = pnand %p262, %p263
      %p265 = pneg %p264
      // Predicated region
      $region9: #{tcn_forward.1} parent=5 // pred_check
        _
      $region10: #{tcn_forward.1} parent=5 // pred_check_branch
        %267 = sbr.rel (%p264) target = $region12
      $region11: #{tcn_forward.1} parent=5 // pred_region
        %s268 = ssub.s32 %s18, 1
        // Predicated region
        $region13: #{tcn_forward.1} parent=11 // pred_check
          %p269 = pneg %p79
        $region14: #{tcn_forward.1} parent=11 // pred_check_branch
          %271 = sbr.rel (%p269) target = $region16
        $region15: #{tcn_forward.1} parent=11 // pred_region
          _
        $region16: #{tcn_forward.1} parent=11 // pred_fallthru
          _
        // Predicated region
        $region17: #{tcn_forward.1} parent=11 // pred_check
          %p272 = pneg %p100
        $region18: #{tcn_forward.1} parent=11 // pred_check_branch
          %274 = sbr.rel (%p272) target = $region20
        $region19: #{tcn_forward.1} parent=11 // pred_region
          _
        $region20: #{tcn_forward.1} parent=11 // pred_fallthru
          _
        // Predicated region
        $region21: #{tcn_forward.1} parent=11 // pred_check
          %p275 = pneg %p121
        $region22: #{tcn_forward.1} parent=11 // pred_check_branch
          %277 = sbr.rel (%p275) target = $region24
        $region23: #{tcn_forward.1} parent=11 // pred_region
          _
        $region24: #{tcn_forward.1} parent=11 // pred_fallthru
          _
        // Predicated region
        $region25: #{tcn_forward.1} parent=11 // pred_check
          %p278 = pneg %p142
        $region26: #{tcn_forward.1} parent=11 // pred_check_branch
          %280 = sbr.rel (%p278) target = $region28
        $region27: #{tcn_forward.1} parent=11 // pred_region
          _
        $region28: #{tcn_forward.1} parent=11 // pred_fallthru
          _
        // Predicated region
        $region29: #{tcn_forward.1} parent=11 // pred_check
          %p281 = pneg %p163
        $region30: #{tcn_forward.1} parent=11 // pred_check_branch
          %283 = sbr.rel (%p281) target = $region32
        $region31: #{tcn_forward.1} parent=11 // pred_region
          _
        $region32: #{tcn_forward.1} parent=11 // pred_fallthru
          _
        // Predicated region
        $region33: #{tcn_forward.1} parent=11 // pred_check
          %p284 = pneg %p184
        $region34: #{tcn_forward.1} parent=11 // pred_check_branch
          %286 = sbr.rel (%p284) target = $region36
        $region35: #{tcn_forward.1} parent=11 // pred_region
          _
        $region36: #{tcn_forward.1} parent=11 // pred_fallthru
          _
        // Predicated region
        $region37: #{tcn_forward.1} parent=11 // pred_check
          %p287 = pneg %p205
        $region38: #{tcn_forward.1} parent=11 // pred_check_branch
          %289 = sbr.rel (%p287) target = $region40
        $region39: #{tcn_forward.1} parent=11 // pred_region
          _
        $region40: #{tcn_forward.1} parent=11 // pred_fallthru
          _
        // Predicated region
        $region41: #{tcn_forward.1} parent=11 // pred_check
          %p290 = pneg %p226
        $region42: #{tcn_forward.1} parent=11 // pred_check_branch
          %292 = sbr.rel (%p290) target = $region44
        $region43: #{tcn_forward.1} parent=11 // pred_region
          _
        $region44: #{tcn_forward.1} parent=11 // pred_fallthru
          _
      $region12: #{tcn_forward.1} parent=5 // pred_fallthru
        _
      %p293 = scmp.lt.s32.totalorder %s18, 2
      // Predicated region
      $region45: #{tcn_forward.1} parent=5 // pred_check
        %p294 = pneg %p293
      $region46: #{tcn_forward.1} parent=5 // pred_check_branch
        %296 = sbr.rel (%p294) target = $region48
      $region47: #{tcn_forward.1} parent=5 // pred_region
        // Predicated region
        $region49: #{tcn_forward.1} parent=47 // pred_check
          %p297 = pneg %p52
        $region50: #{tcn_forward.1} parent=47 // pred_check_branch
          %299 = sbr.rel (%p297) target = $region52
        $region51: #{tcn_forward.1} parent=47 // pred_region
          %p300 = scmp.lt.s32.totalorder %s26, 1
          %s301 = scalar_select %p300, %s26, 1
          %p302 = scmp.lt.s32.totalorder %s25, 0
          %s303 = scalar_select %p302, %s25, 0
          %s304 = sadd.s32 %s303, %s301
          %s305 = smul.addr %s304, 4
          %s306 = scalar_lea.vmem %s0, %s305
        $region52: #{tcn_forward.1} parent=47 // pred_fallthru
          _
      $region48: #{tcn_forward.1} parent=5 // pred_fallthru
        _
      %p307 = scmp.le.s32.totalorder 1, %s18
      %p308 = scmp.lt.s32.totalorder %s18, 3
      %p309 = pnand %p307, %p308
      %p310 = pneg %p309
      // Predicated region
      $region53: #{tcn_forward.1} parent=5 // pred_check
        _
      $region54: #{tcn_forward.1} parent=5 // pred_check_branch
        %312 = sbr.rel (%p309) target = $region56
      $region55: #{tcn_forward.1} parent=5 // pred_region
        %s313 = ssub.s32 %s18, 1
        %p314 = scmp.lt.s32.totalorder %s28, 1
        %s315 = scalar_select %p314, %s28, 1
        %p316 = scmp.lt.s32.totalorder %s27, 0
        %s317 = scalar_select %p316, %s27, 0
        %s318 = sadd.s32 %s317, %s315
        %s319 = smul.addr %s318, 4
        %s320 = scalar_lea.vmem %s0, %s319
        %p321 = pneg %p58
        %p322 = pneg %p55
        %p323 = pneg %p79
        %p324 = pneg %p76
        %p325 = pneg %p100
        %p326 = pneg %p97
        %p327 = pneg %p121
        %p328 = pneg %p118
        %p329 = pneg %p142
        %p330 = pneg %p139
        %p331 = pneg %p163
        %p332 = pneg %p160
        %p333 = pneg %p184
        %p334 = pneg %p181
        %p335 = pneg %p205
        %p336 = pneg %p202
        %p337 = pneg %p226
        %p338 = pneg %p223
        %p339 = pneg %p254
        %p340 = pneg %p251
        %s341 = sand.u32 %s241, 1
        %s342 = scalar_lea.sflag [#allocation3], %s341
        %s343 = sand.u32 %s241, 1
        %s344 = smul.addr %s343, 8
        %s345 = scalar_lea.vmem [#allocation2], %s344
        %p346 = scmp.lt.s32.totalorder %s28, 1
        %s347 = scalar_select %p346, %s28, 1
        %p348 = scmp.lt.s32.totalorder %s27, 0
        %s349 = scalar_select %p348, %s27, 0
        %s350 = sadd.s32 %s349, %s347
        %s351 = smul.addr %s350, 4
        %s352 = scalar_lea.vmem %s0, %s351
        %v354 = vld [vmem:[%s352] sm:$0xf]
        %356 = vrot.lane.b32.xlu0 %v354, 6
        %v357 = vpop.permute.xlu0 %356
        %vm359 = vcmask 48128
        %v360 = vsel %vm359, 0.0, %v357
        %s361 = smul.u32 %s27, 16
        %s362 = ssub.s32 %s361, 6
        %v363 = vlaneseq
        %v364 = vand.u32 %v363, 127
        %v365 = vstv %s362
        %v366 = vadd.s32 %v365, %v364
        %vm367 = vcmp.ge.s32.totalorder %v366, 0
        %v368 = vld [vmem:[%s1] sm:$0xf]
        %v369 = vld [vmem:[%s1 + $0x4] sm:$0xf]
        %v370 = vld [vmem:[%s1 + $0x8] sm:$0xf]
        %v371 = vld [vmem:[%s1 + $0xc] sm:$0xf]
        %v372 = vpack.c.bf16 %v360, %v360
        %v373 = vld [vmem:[%s2] sm:$0xff]
        %v374 = vld [vmem:[%s2 + $0x8] sm:$0xff]
        %v375 = vld [vmem:[%s2 + $0x10] sm:$0xff]
        %v376 = vld [vmem:[%s2 + $0x18] sm:$0xff]
        %378 = vset.pattern.permute.xlu0 0
        %379 = vperm.xlu0 %378, %v373
        %v380 = vpop.permute.xlu0 %379
        %383 = vset.pattern.permute.xlu0 0
        %384 = vperm.xlu0 %383, %v374
        %v385 = vpop.permute.xlu0 %384
        %388 = vset.pattern.permute.xlu0 0
        %389 = vperm.xlu0 %388, %v375
        %v390 = vpop.permute.xlu0 %389
        %393 = vset.pattern.permute.xlu0 0
        %394 = vperm.xlu0 %393, %v376
        %v395 = vpop.permute.xlu0 %394
        %v401 = vunpack.c.l.b16 %v368
        %v402 = vunpack.c.l.b16 %v369
        %v403 = vunpack.c.l.b16 %v370
        %v404 = vunpack.c.l.b16 %v371
        %v405 = vpack.c.b16 %v402, %v401
        %v406 = vpack.c.b16 %v404, %v403
        %vm407 = vcmask 31744
        %v409 = vsel %vm407, %v405, 0
        %v412 = vsel %vm407, %v406, 0
        %vm414 = vcmask 1041408
        %v416 = vsel %vm414, %v372, 0
        %418 = vmatprep.subr.bf16.mxu0 0
        %419 = vmatpush1.bf16.msra.mxu0 0
        %420 = vmatprep.subr.bf16.mxu0 0
        %421 = vmatpush1.bf16.msra.mxu0 0
        %422 = vmatprep.subr.bf16.mxu0 0
        %423 = vmatpush1.bf16.msra.mxu0 0
        %424 = vmatprep.subr.bf16.mxu0 0
        %425 = vmatpush1.bf16.msra.mxu0 0
        %426 = vmatprep.subr.bf16.mxu0 0
        %427 = vmatpush1.bf16.msra.mxu0 0
        %428 = vmatprep.subr.bf16.mxu0 0
        %429 = vmatpush1.bf16.msra.mxu0 0
        %430 = vmatprep.subr.bf16.mxu0 0
        %431 = vmatpush1.bf16.msra.mxu0 0
        %432 = vmatprep.subr.bf16.mxu0 0
        %433 = vmatpush1.bf16.msra.mxu0 %v416
        %434 = vmatprep.subr.bf16.mxu0 0
        %435 = vmatpush2.bf16.msra.mxu0 0
        %436 = vmatprep.subr.bf16.mxu0 0
        %437 = vmatpush2.bf16.msra.mxu0 0
        %438 = vmatprep.subr.bf16.mxu0 0
        %439 = vmatpush2.bf16.msra.mxu0 0
        %440 = vmatprep.subr.bf16.mxu0 0
        %441 = vmatpush2.bf16.msra.mxu0 0
        %442 = vmatprep.subr.bf16.mxu0 0
        %443 = vmatpush2.bf16.msra.mxu0 0
        %444 = vmatprep.subr.bf16.mxu0 0
        %445 = vmatpush2.bf16.msra.mxu0 0
        %446 = vmatprep.subr.bf16.mxu0 0
        %447 = vmatpush2.bf16.msra.mxu0 0
        %448 = vmatprep.subr.bf16.mxu0 0
        %449 = vmatpush2.bf16.msra.mxu0 0
        %450 = vmatprep.mubr.bf16.mxu0 0
        %451 = vmatmul.mubr.bf16.gmra.mxu0 %v409
        %v452 = vpop.f32.mrf.mxu0
        %v453 = vadd.f32 %v380, %v452
        %v454 = vpop.f32.mrf.mxu0
        %v455 = vpop.f32.mrf.mxu0
        %v456 = vadd.f32 %v385, %v455
        %v457 = vpop.f32.mrf.mxu0
        %458 = vmatprep.mubr.bf16.mxu0 0
        %459 = vmatmul.mubr.bf16.gmra.mxu0 %v412
        %v460 = vpop.f32.mrf.mxu0
        %v461 = vadd.f32 %v390, %v460
        %v462 = vpop.f32.mrf.mxu0
        %v463 = vpop.f32.mrf.mxu0
        %v464 = vadd.f32 %v395, %v463
        %v465 = vpop.f32.mrf.mxu0
        %466 = vdwg.mxu0
        %v467 = vmax.f32 %v453, 0.0
        %v468 = vmax.f32 %v456, 0.0
        %v469 = vmax.f32 %v461, 0.0
        %v470 = vmax.f32 %v464, 0.0
        %471 = vset.pattern.permute.xlu0 1
        %472 = vperm.xlu0 %471, %v373
        %v473 = vpop.permute.xlu0 %472
        %475 = vset.pattern.permute.xlu0 1
        %476 = vperm.xlu0 %475, %v374
        %v477 = vpop.permute.xlu0 %476
        %479 = vset.pattern.permute.xlu0 1
        %480 = vperm.xlu0 %479, %v375
        %v481 = vpop.permute.xlu0 %480
        %483 = vset.pattern.permute.xlu0 1
        %484 = vperm.xlu0 %483, %v376
        %v485 = vpop.permute.xlu0 %484
        %v487 = vmul.f32 %v467, %v473
        %v488 = vmul.f32 %v468, %v477
        %v489 = vmul.f32 %v469, %v481
        %v490 = vmul.f32 %v470, %v485
        %491 = vset.pattern.permute.xlu0 2
        %492 = vperm.xlu0 %491, %v373
        %v493 = vpop.permute.xlu0 %492
        %495 = vset.pattern.permute.xlu0 2
        %496 = vperm.xlu0 %495, %v374
        %v497 = vpop.permute.xlu0 %496
        %499 = vset.pattern.permute.xlu0 2
        %500 = vperm.xlu0 %499, %v375
        %v501 = vpop.permute.xlu0 %500
        %503 = vset.pattern.permute.xlu0 2
        %504 = vperm.xlu0 %503, %v376
        %v505 = vpop.permute.xlu0 %504
        %v507 = vadd.f32 %v487, %v493
        %v508 = vadd.f32 %v488, %v497
        %v509 = vadd.f32 %v489, %v501
        %v510 = vadd.f32 %v490, %v505
        %v511 = vld [vmem:[%s3] sm:$0xff]
        %v512 = vld [vmem:[%s3 + $0x8] sm:$0xff]
        %v513 = vld [vmem:[%s3 + $0x10] sm:$0xff]
        %v514 = vld [vmem:[%s3 + $0x18] sm:$0xff]
        %516 = vset.pattern.permute.xlu0 0
        %517 = vperm.xlu0 %516, %v511
        %v518 = vpop.permute.xlu0 %517
        %521 = vset.pattern.permute.xlu0 0
        %522 = vperm.xlu0 %521, %v512
        %v523 = vpop.permute.xlu0 %522
        %526 = vset.pattern.permute.xlu0 0
        %527 = vperm.xlu0 %526, %v513
        %v528 = vpop.permute.xlu0 %527
        %531 = vset.pattern.permute.xlu0 0
        %532 = vperm.xlu0 %531, %v514
        %v533 = vpop.permute.xlu0 %532
        %v535 = vmul.f32 %v507, %v518
        %v536 = vmul.f32 %v508, %v523
        %v537 = vmul.f32 %v509, %v528
        %v538 = vmul.f32 %v510, %v533
        %539 = vset.pattern.permute.xlu0 1
        %540 = vperm.xlu0 %539, %v511
        %v541 = vpop.permute.xlu0 %540
        %543 = vset.pattern.permute.xlu0 1
        %544 = vperm.xlu0 %543, %v512
        %v545 = vpop.permute.xlu0 %544
        %547 = vset.pattern.permute.xlu0 1
        %548 = vperm.xlu0 %547, %v513
        %v549 = vpop.permute.xlu0 %548
        %551 = vset.pattern.permute.xlu0 1
        %552 = vperm.xlu0 %551, %v514
        %v553 = vpop.permute.xlu0 %552
        %v555 = vadd.f32 %v535, %v541
        %v556 = vadd.f32 %v536, %v545
        %v557 = vadd.f32 %v537, %v549
        %v558 = vadd.f32 %v538, %v553
        %v559 = vmax.f32 %v555, 0.0
        %v560 = vmax.f32 %v556, 0.0
        %v561 = vmax.f32 %v557, 0.0
        %v562 = vmax.f32 %v558, 0.0
        %v563 = vpack.c.bf16 %v560, %v559
        %v564 = vpack.c.bf16 %v562, %v561
        %v565 = vld [vmem:[%s4] sm:$0xf]
        %v566 = vld [vmem:[%s4 + $0x4] sm:$0xf]
        %567 = vset.pattern.permute.xlu0 2
        %568 = vperm.xlu0 %567, %v511
        %v569 = vpop.permute.xlu0 %568
        %571 = vset.pattern.permute.xlu0 2
        %572 = vperm.xlu0 %571, %v512
        %v573 = vpop.permute.xlu0 %572
        %v577 = vunpack.c.l.b16 %v565
        %v578 = vunpack.c.l.b16 %v566
        %v579 = vpack.c.b16 %v578, %v577
        %vm580 = vcmask 261120
        %v582 = vsel %vm580, %v579, 0
        %584 = vmatprep.subr.bf16.mxu0 0
        %585 = vmatpush1.bf16.msra.mxu0 0
        %586 = vmatprep.subr.bf16.mxu0 0
        %587 = vmatpush1.bf16.msra.mxu0 0
        %588 = vmatprep.subr.bf16.mxu0 0
        %589 = vmatpush1.bf16.msra.mxu0 0
        %590 = vmatprep.subr.bf16.mxu0 0
        %591 = vmatpush1.bf16.msra.mxu0 0
        %592 = vmatprep.subr.bf16.mxu0 0
        %593 = vmatpush1.bf16.msra.mxu0 0
        %594 = vmatprep.subr.bf16.mxu0 0
        %595 = vmatpush1.bf16.msra.mxu0 0
        %596 = vmatprep.subr.bf16.mxu0 0
        %597 = vmatpush1.bf16.msra.mxu0 %v564
        %598 = vmatprep.subr.bf16.mxu0 0
        %599 = vmatpush1.bf16.msra.mxu0 %v563
        %600 = vmatprep.subr.bf16.mxu0 0
        %601 = vmatpush2.bf16.msra.mxu0 0
        %602 = vmatprep.subr.bf16.mxu0 0
        %603 = vmatpush2.bf16.msra.mxu0 0
        %604 = vmatprep.subr.bf16.mxu0 0
        %605 = vmatpush2.bf16.msra.mxu0 0
        %606 = vmatprep.subr.bf16.mxu0 0
        %607 = vmatpush2.bf16.msra.mxu0 0
        %608 = vmatprep.subr.bf16.mxu0 0
        %609 = vmatpush2.bf16.msra.mxu0 0
        %610 = vmatprep.subr.bf16.mxu0 0
        %611 = vmatpush2.bf16.msra.mxu0 0
        %612 = vmatprep.subr.bf16.mxu0 0
        %613 = vmatpush2.bf16.msra.mxu0 0
        %614 = vmatprep.subr.bf16.mxu0 0
        %615 = vmatpush2.bf16.msra.mxu0 0
        %616 = vmatprep.mubr.bf16.mxu0 0
        %617 = vmatmul.mubr.bf16.gmra.mxu0 %v582
        %v618 = vpop.f32.mrf.mxu0
        %v619 = vadd.f32 %v569, %v618
        %v620 = vpop.f32.mrf.mxu0
        %v621 = vpop.f32.mrf.mxu0
        %v622 = vadd.f32 %v573, %v621
        %v623 = vpop.f32.mrf.mxu0
        %624 = vdwg.mxu0
        %625 = vset.pattern.permute.xlu0 3
        %626 = vperm.xlu0 %625, %v511
        %v627 = vpop.permute.xlu0 %626
        %629 = vset.pattern.permute.xlu0 3
        %630 = vperm.xlu0 %629, %v512
        %v631 = vpop.permute.xlu0 %630
        %v633 = vmul.f32 %v619, %v627
        %v634 = vmul.f32 %v622, %v631
        %635 = vset.pattern.permute.xlu0 4
        %636 = vperm.xlu0 %635, %v511
        %v637 = vpop.permute.xlu0 %636
        %639 = vset.pattern.permute.xlu0 4
        %640 = vperm.xlu0 %639, %v512
        %v641 = vpop.permute.xlu0 %640
        %v643 = vadd.f32 %v633, %v637
        %v644 = vadd.f32 %v634, %v641
        %v645 = vmax.f32 %v643, 0.0
        %v646 = vmax.f32 %v644, 0.0
        %v647 = vsel %vm367, 1, 0
        %vm648 = vcmp.eq.s32.totalorder %v647, 1
        %v649 = vsel %vm648, %v645, 0.0
        %v650 = vsel %vm648, %v646, 0.0
        %v651 = vpack.c.bf16 %v650, %v649
        %653 = vrot.lane.b32.xlu0 %v651, 2
        %v654 = vpop.permute.xlu0 %653
        %vm655 = vcmask 15360
        %v658 = vsel %vm655, 0, %v654
        %661 = vrot.lane.b32.xlu0 %v658, 127
        %v662 = vpop.permute.xlu0 %661
        %664 = vrot.lane.b32.xlu0 %v658, 126
        %v665 = vpop.permute.xlu0 %664
        %v667 = vld [vmem:[%s5] sm:$0xf]
        %v668 = vld [vmem:[%s5 + $0x4] sm:$0xf]
        %669 = vset.pattern.permute.xlu0 5
        %670 = vperm.xlu0 %669, %v511
        %v671 = vpop.permute.xlu0 %670
        %673 = vset.pattern.permute.xlu0 5
        %674 = vperm.xlu0 %673, %v512
        %v675 = vpop.permute.xlu0 %674
        %v679 = vunpack.c.l.b16 %v667
        %v680 = vunpack.c.l.b16 %v668
        %v681 = vpack.c.b16 %v680, %v679
        %vm682 = vcmask 392192
        %v684 = vsel %vm682, %v681, 0
        %686 = vmatprep.subr.bf16.mxu0 0
        %687 = vmatpush1.bf16.msra.mxu0 0
        %688 = vmatprep.subr.bf16.mxu0 0
        %689 = vmatpush1.bf16.msra.mxu0 0
        %690 = vmatprep.subr.bf16.mxu0 0
        %691 = vmatpush1.bf16.msra.mxu0 0
        %692 = vmatprep.subr.bf16.mxu0 0
        %693 = vmatpush1.bf16.msra.mxu0 0
        %694 = vmatprep.subr.bf16.mxu0 0
        %695 = vmatpush1.bf16.msra.mxu0 0
        %696 = vmatprep.subr.bf16.mxu0 0
        %697 = vmatpush1.bf16.msra.mxu0 %v665
        %698 = vmatprep.subr.bf16.mxu0 0
        %699 = vmatpush1.bf16.msra.mxu0 %v662
        %700 = vmatprep.subr.bf16.mxu0 0
        %701 = vmatpush1.bf16.msra.mxu0 %v658
        %702 = vmatprep.subr.bf16.mxu0 0
        %703 = vmatpush2.bf16.msra.mxu0 0
        %704 = vmatprep.subr.bf16.mxu0 0
        %705 = vmatpush2.bf16.msra.mxu0 0
        %706 = vmatprep.subr.bf16.mxu0 0
        %707 = vmatpush2.bf16.msra.mxu0 0
        %708 = vmatprep.subr.bf16.mxu0 0
        %709 = vmatpush2.bf16.msra.mxu0 0
        %710 = vmatprep.subr.bf16.mxu0 0
        %711 = vmatpush2.bf16.msra.mxu0 0
        %712 = vmatprep.subr.bf16.mxu0 0
        %713 = vmatpush2.bf16.msra.mxu0 0
        %714 = vmatprep.subr.bf16.mxu0 0
        %715 = vmatpush2.bf16.msra.mxu0 0
        %716 = vmatprep.subr.bf16.mxu0 0
        %717 = vmatpush2.bf16.msra.mxu0 0
        %718 = vmatprep.mubr.bf16.mxu0 0
        %719 = vmatmul.mubr.bf16.gmra.mxu0 %v684
        %v720 = vpop.f32.mrf.mxu0
        %v721 = vadd.f32 %v671, %v720
        %v722 = vpop.f32.mrf.mxu0
        %v723 = vpop.f32.mrf.mxu0
        %v724 = vadd.f32 %v675, %v723
        %v725 = vpop.f32.mrf.mxu0
        %726 = vdwg.mxu0
        %727 = vset.pattern.permute.xlu0 6
        %728 = vperm.xlu0 %727, %v511
        %v729 = vpop.permute.xlu0 %728
        %731 = vset.pattern.permute.xlu0 6
        %732 = vperm.xlu0 %731, %v512
        %v733 = vpop.permute.xlu0 %732
        %v735 = vmul.f32 %v721, %v729
        %v736 = vmul.f32 %v724, %v733
        %737 = vset.pattern.permute.xlu0 7
        %738 = vperm.xlu0 %737, %v511
        %v739 = vpop.permute.xlu0 %738
        %741 = vset.pattern.permute.xlu0 7
        %742 = vperm.xlu0 %741, %v512
        %v743 = vpop.permute.xlu0 %742
        %v745 = vadd.f32 %v735, %v739
        %v746 = vadd.f32 %v736, %v743
        %v747 = vmax.f32 %v745, 0.0
        %v748 = vmax.f32 %v746, 0.0
        %v749 = vpack.c.bf16 %v748, %v747
        %v750 = vld [vmem:[%s6] sm:$0xf]
        %v751 = vld [vmem:[%s6 + $0x4] sm:$0xf]
        %v752 = vld [vmem:[%s6 + $0x8] sm:$0xf]
        %v753 = vld [vmem:[%s6 + $0xc] sm:$0xf]
        %754 = vset.pattern.permute.xlu0 8
        %755 = vperm.xlu0 %754, %v511
        %v756 = vpop.permute.xlu0 %755
        %758 = vset.pattern.permute.xlu0 8
        %759 = vperm.xlu0 %758, %v512
        %v760 = vpop.permute.xlu0 %759
        %762 = vset.pattern.permute.xlu0 8
        %763 = vperm.xlu0 %762, %v513
        %v764 = vpop.permute.xlu0 %763
        %766 = vset.pattern.permute.xlu0 8
        %767 = vperm.xlu0 %766, %v514
        %v768 = vpop.permute.xlu0 %767
        %v774 = vunpack.c.l.b16 %v750
        %v775 = vunpack.c.l.b16 %v751
        %v776 = vunpack.c.l.b16 %v752
        %v777 = vunpack.c.l.b16 %v753
        %v778 = vpack.c.b16 %v775, %v774
        %v779 = vpack.c.b16 %v777, %v776
        %vm780 = vcmask 130048
        %v782 = vsel %vm780, %v778, 0
        %v785 = vsel %vm780, %v779, 0
        %787 = vmatprep.subr.bf16.mxu0 0
        %788 = vmatpush1.bf16.msra.mxu0 0
        %789 = vmatprep.subr.bf16.mxu0 0
        %790 = vmatpush1.bf16.msra.mxu0 0
        %791 = vmatprep.subr.bf16.mxu0 0
        %792 = vmatpush1.bf16.msra.mxu0 0
        %793 = vmatprep.subr.bf16.mxu0 0
        %794 = vmatpush1.bf16.msra.mxu0 0
        %795 = vmatprep.subr.bf16.mxu0 0
        %796 = vmatpush1.bf16.msra.mxu0 0
        %797 = vmatprep.subr.bf16.mxu0 0
        %798 = vmatpush1.bf16.msra.mxu0 0
        %799 = vmatprep.subr.bf16.mxu0 0
        %800 = vmatpush1.bf16.msra.mxu0 0
        %801 = vmatprep.subr.bf16.mxu0 0
        %802 = vmatpush1.bf16.msra.mxu0 %v749
        %803 = vmatprep.subr.bf16.mxu0 0
        %804 = vmatpush2.bf16.msra.mxu0 0
        %805 = vmatprep.subr.bf16.mxu0 0
        %806 = vmatpush2.bf16.msra.mxu0 0
        %807 = vmatprep.subr.bf16.mxu0 0
        %808 = vmatpush2.bf16.msra.mxu0 0
        %809 = vmatprep.subr.bf16.mxu0 0
        %810 = vmatpush2.bf16.msra.mxu0 0
        %811 = vmatprep.subr.bf16.mxu0 0
        %812 = vmatpush2.bf16.msra.mxu0 0
        %813 = vmatprep.subr.bf16.mxu0 0
        %814 = vmatpush2.bf16.msra.mxu0 0
        %815 = vmatprep.subr.bf16.mxu0 0
        %816 = vmatpush2.bf16.msra.mxu0 0
        %817 = vmatprep.subr.bf16.mxu0 0
        %818 = vmatpush2.bf16.msra.mxu0 0
        %819 = vmatprep.mubr.bf16.mxu0 0
        %820 = vmatmul.mubr.bf16.gmra.mxu0 %v782
        %v821 = vpop.f32.mrf.mxu0
        %v822 = vadd.f32 %v756, %v821
        %v823 = vpop.f32.mrf.mxu0
        %v824 = vpop.f32.mrf.mxu0
        %v825 = vadd.f32 %v760, %v824
        %v826 = vpop.f32.mrf.mxu0
        %827 = vmatprep.mubr.bf16.mxu0 0
        %828 = vmatmul.mubr.bf16.gmra.mxu0 %v785
        %v829 = vpop.f32.mrf.mxu0
        %v830 = vadd.f32 %v764, %v829
        %v831 = vpop.f32.mrf.mxu0
        %v832 = vpop.f32.mrf.mxu0
        %v833 = vadd.f32 %v768, %v832
        %v834 = vpop.f32.mrf.mxu0
        %835 = vdwg.mxu0
        %v836 = vadd.f32 %v507, %v822
        %v837 = vadd.f32 %v508, %v825
        %v838 = vadd.f32 %v509, %v830
        %v839 = vadd.f32 %v510, %v833
        %s840 = scalar_lea.vmem %s3, 32
        %v841 = vld [vmem:[%s840] sm:$0xff]
        %v842 = vld [vmem:[%s840 + $0x8] sm:$0xff]
        %v843 = vld [vmem:[%s840 + $0x10] sm:$0xff]
        %v844 = vld [vmem:[%s840 + $0x18] sm:$0xff]
        %846 = vset.pattern.permute.xlu0 0
        %847 = vperm.xlu0 %846, %v841
        %v848 = vpop.permute.xlu0 %847
        %851 = vset.pattern.permute.xlu0 0
        %852 = vperm.xlu0 %851, %v842
        %v853 = vpop.permute.xlu0 %852
        %856 = vset.pattern.permute.xlu0 0
        %857 = vperm.xlu0 %856, %v843
        %v858 = vpop.permute.xlu0 %857
        %861 = vset.pattern.permute.xlu0 0
        %862 = vperm.xlu0 %861, %v844
        %v863 = vpop.permute.xlu0 %862
        %v865 = vmul.f32 %v836, %v848
        %v866 = vmul.f32 %v837, %v853
        %v867 = vmul.f32 %v838, %v858
        %v868 = vmul.f32 %v839, %v863
        %869 = vset.pattern.permute.xlu0 1
        %870 = vperm.xlu0 %869, %v841
        %v871 = vpop.permute.xlu0 %870
        %873 = vset.pattern.permute.xlu0 1
        %874 = vperm.xlu0 %873, %v842
        %v875 = vpop.permute.xlu0 %874
        %877 = vset.pattern.permute.xlu0 1
        %878 = vperm.xlu0 %877, %v843
        %v879 = vpop.permute.xlu0 %878
        %881 = vset.pattern.permute.xlu0 1
        %882 = vperm.xlu0 %881, %v844
        %v883 = vpop.permute.xlu0 %882
        %v885 = vadd.f32 %v865, %v871
        %v886 = vadd.f32 %v866, %v875
        %v887 = vadd.f32 %v867, %v879
        %v888 = vadd.f32 %v868, %v883
        %v889 = vmax.f32 %v885, 0.0
        %v890 = vmax.f32 %v886, 0.0
        %v891 = vmax.f32 %v887, 0.0
        %v892 = vmax.f32 %v888, 0.0
        %v893 = vpack.c.bf16 %v890, %v889
        %v894 = vpack.c.bf16 %v892, %v891
        %s895 = scalar_lea.vmem %s4, 8
        %v896 = vld [vmem:[%s895] sm:$0xf]
        %v897 = vld [vmem:[%s895 + $0x4] sm:$0xf]
        %898 = vset.pattern.permute.xlu0 2
        %899 = vperm.xlu0 %898, %v841
        %v900 = vpop.permute.xlu0 %899
        %902 = vset.pattern.permute.xlu0 2
        %903 = vperm.xlu0 %902, %v842
        %v904 = vpop.permute.xlu0 %903
        %v908 = vunpack.c.l.b16 %v896
        %v909 = vunpack.c.l.b16 %v897
        %v910 = vpack.c.b16 %v909, %v908
        %v912 = vsel %vm580, %v910, 0
        %914 = vmatprep.subr.bf16.mxu0 0
        %915 = vmatpush1.bf16.msra.mxu0 0
        %916 = vmatprep.subr.bf16.mxu0 0
        %917 = vmatpush1.bf16.msra.mxu0 0
        %918 = vmatprep.subr.bf16.mxu0 0
        %919 = vmatpush1.bf16.msra.mxu0 0
        %920 = vmatprep.subr.bf16.mxu0 0
        %921 = vmatpush1.bf16.msra.mxu0 0
        %922 = vmatprep.subr.bf16.mxu0 0
        %923 = vmatpush1.bf16.msra.mxu0 0
        %924 = vmatprep.subr.bf16.mxu0 0
        %925 = vmatpush1.bf16.msra.mxu0 0
        %926 = vmatprep.subr.bf16.mxu0 0
        %927 = vmatpush1.bf16.msra.mxu0 %v894
        %928 = vmatprep.subr.bf16.mxu0 0
        %929 = vmatpush1.bf16.msra.mxu0 %v893
        %930 = vmatprep.subr.bf16.mxu0 0
        %931 = vmatpush2.bf16.msra.mxu0 0
        %932 = vmatprep.subr.bf16.mxu0 0
        %933 = vmatpush2.bf16.msra.mxu0 0
        %934 = vmatprep.subr.bf16.mxu0 0
        %935 = vmatpush2.bf16.msra.mxu0 0
        %936 = vmatprep.subr.bf16.mxu0 0
        %937 = vmatpush2.bf16.msra.mxu0 0
        %938 = vmatprep.subr.bf16.mxu0 0
        %939 = vmatpush2.bf16.msra.mxu0 0
        %940 = vmatprep.subr.bf16.mxu0 0
        %941 = vmatpush2.bf16.msra.mxu0 0
        %942 = vmatprep.subr.bf16.mxu0 0
        %943 = vmatpush2.bf16.msra.mxu0 0
        %944 = vmatprep.subr.bf16.mxu0 0
        %945 = vmatpush2.bf16.msra.mxu0 0
        %946 = vmatprep.mubr.bf16.mxu0 0
        %947 = vmatmul.mubr.bf16.gmra.mxu0 %v912
        %v948 = vpop.f32.mrf.mxu0
        %v949 = vadd.f32 %v900, %v948
        %v950 = vpop.f32.mrf.mxu0
        %v951 = vpop.f32.mrf.mxu0
        %v952 = vadd.f32 %v904, %v951
        %v953 = vpop.f32.mrf.mxu0
        %954 = vdwg.mxu0
        %955 = vset.pattern.permute.xlu0 3
        %956 = vperm.xlu0 %955, %v841
        %v957 = vpop.permute.xlu0 %956
        %959 = vset.pattern.permute.xlu0 3
        %960 = vperm.xlu0 %959, %v842
        %v961 = vpop.permute.xlu0 %960
        %v963 = vmul.f32 %v949, %v957
        %v964 = vmul.f32 %v952, %v961
        %965 = vset.pattern.permute.xlu0 4
        %966 = vperm.xlu0 %965, %v841
        %v967 = vpop.permute.xlu0 %966
        %969 = vset.pattern.permute.xlu0 4
        %970 = vperm.xlu0 %969, %v842
        %v971 = vpop.permute.xlu0 %970
        %v973 = vadd.f32 %v963, %v967
        %v974 = vadd.f32 %v964, %v971
        %v975 = vmax.f32 %v973, 0.0
        %v976 = vmax.f32 %v974, 0.0
        %v977 = vsel %vm648, %v975, 0.0
        %v978 = vsel %vm648, %v976, 0.0
        %v979 = vpack.c.bf16 %v978, %v977
        %981 = vrot.lane.b32.xlu0 %v979, 4
        %v982 = vpop.permute.xlu0 %981
        %v984 = vsel %vm407, 0, %v982
        %987 = vrot.lane.b32.xlu0 %v984, 126
        %v988 = vpop.permute.xlu0 %987
        %990 = vrot.lane.b32.xlu0 %v984, 124
        %v991 = vpop.permute.xlu0 %990
        %s993 = scalar_lea.vmem %s5, 8
        %v994 = vld [vmem:[%s993] sm:$0xf]
        %v995 = vld [vmem:[%s993 + $0x4] sm:$0xf]
        %996 = vset.pattern.permute.xlu0 5
        %997 = vperm.xlu0 %996, %v841
        %v998 = vpop.permute.xlu0 %997
        %1000 = vset.pattern.permute.xlu0 5
        %1001 = vperm.xlu0 %1000, %v842
        %v1002 = vpop.permute.xlu0 %1001
        %v1006 = vunpack.c.l.b16 %v994
        %v1007 = vunpack.c.l.b16 %v995
        %v1008 = vpack.c.b16 %v1007, %v1006
        %v1010 = vsel %vm682, %v1008, 0
        %1012 = vmatprep.subr.bf16.mxu0 0
        %1013 = vmatpush1.bf16.msra.mxu0 0
        %1014 = vmatprep.subr.bf16.mxu0 0
        %1015 = vmatpush1.bf16.msra.mxu0 0
        %1016 = vmatprep.subr.bf16.mxu0 0
        %1017 = vmatpush1.bf16.msra.mxu0 0
        %1018 = vmatprep.subr.bf16.mxu0 0
        %1019 = vmatpush1.bf16.msra.mxu0 0
        %1020 = vmatprep.subr.bf16.mxu0 0
        %1021 = vmatpush1.bf16.msra.mxu0 0
        %1022 = vmatprep.subr.bf16.mxu0 0
        %1023 = vmatpush1.bf16.msra.mxu0 %v991
        %1024 = vmatprep.subr.bf16.mxu0 0
        %1025 = vmatpush1.bf16.msra.mxu0 %v988
        %1026 = vmatprep.subr.bf16.mxu0 0
        %1027 = vmatpush1.bf16.msra.mxu0 %v984
        %1028 = vmatprep.subr.bf16.mxu0 0
        %1029 = vmatpush2.bf16.msra.mxu0 0
        %1030 = vmatprep.subr.bf16.mxu0 0
        %1031 = vmatpush2.bf16.msra.mxu0 0
        %1032 = vmatprep.subr.bf16.mxu0 0
        %1033 = vmatpush2.bf16.msra.mxu0 0
        %1034 = vmatprep.subr.bf16.mxu0 0
        %1035 = vmatpush2.bf16.msra.mxu0 0
        %1036 = vmatprep.subr.bf16.mxu0 0
        %1037 = vmatpush2.bf16.msra.mxu0 0
        %1038 = vmatprep.subr.bf16.mxu0 0
        %1039 = vmatpush2.bf16.msra.mxu0 0
        %1040 = vmatprep.subr.bf16.mxu0 0
        %1041 = vmatpush2.bf16.msra.mxu0 0
        %1042 = vmatprep.subr.bf16.mxu0 0
        %1043 = vmatpush2.bf16.msra.mxu0 0
        %1044 = vmatprep.mubr.bf16.mxu0 0
        %1045 = vmatmul.mubr.bf16.gmra.mxu0 %v1010
        %v1046 = vpop.f32.mrf.mxu0
        %v1047 = vadd.f32 %v998, %v1046
        %v1048 = vpop.f32.mrf.mxu0
        %v1049 = vpop.f32.mrf.mxu0
        %v1050 = vadd.f32 %v1002, %v1049
        %v1051 = vpop.f32.mrf.mxu0
        %1052 = vdwg.mxu0
        %1053 = vset.pattern.permute.xlu0 6
        %1054 = vperm.xlu0 %1053, %v841
        %v1055 = vpop.permute.xlu0 %1054
        %1057 = vset.pattern.permute.xlu0 6
        %1058 = vperm.xlu0 %1057, %v842
        %v1059 = vpop.permute.xlu0 %1058
        %v1061 = vmul.f32 %v1047, %v1055
        %v1062 = vmul.f32 %v1050, %v1059
        %1063 = vset.pattern.permute.xlu0 7
        %1064 = vperm.xlu0 %1063, %v841
        %v1065 = vpop.permute.xlu0 %1064
        %1067 = vset.pattern.permute.xlu0 7
        %1068 = vperm.xlu0 %1067, %v842
        %v1069 = vpop.permute.xlu0 %1068
        %v1071 = vadd.f32 %v1061, %v1065
        %v1072 = vadd.f32 %v1062, %v1069
        %v1073 = vmax.f32 %v1071, 0.0
        %v1074 = vmax.f32 %v1072, 0.0
        %v1075 = vpack.c.bf16 %v1074, %v1073
        %s1076 = scalar_lea.vmem %s6, 16
        %v1077 = vld [vmem:[%s1076] sm:$0xf]
        %v1078 = vld [vmem:[%s1076 + $0x4] sm:$0xf]
        %v1079 = vld [vmem:[%s1076 + $0x8] sm:$0xf]
        %v1080 = vld [vmem:[%s1076 + $0xc] sm:$0xf]
        %1081 = vset.pattern.permute.xlu0 8
        %1082 = vperm.xlu0 %1081, %v841
        %v1083 = vpop.permute.xlu0 %1082
        %1085 = vset.pattern.permute.xlu0 8
        %1086 = vperm.xlu0 %1085, %v842
        %v1087 = vpop.permute.xlu0 %1086
        %1089 = vset.pattern.permute.xlu0 8
        %1090 = vperm.xlu0 %1089, %v843
        %v1091 = vpop.permute.xlu0 %1090
        %1093 = vset.pattern.permute.xlu0 8
        %1094 = vperm.xlu0 %1093, %v844
        %v1095 = vpop.permute.xlu0 %1094
        %v1101 = vunpack.c.l.b16 %v1077
        %v1102 = vunpack.c.l.b16 %v1078
        %v1103 = vunpack.c.l.b16 %v1079
        %v1104 = vunpack.c.l.b16 %v1080
        %v1105 = vpack.c.b16 %v1102, %v1101
        %v1106 = vpack.c.b16 %v1104, %v1103
        %v1108 = vsel %vm780, %v1105, 0
        %v1111 = vsel %vm780, %v1106, 0
        %1113 = vmatprep.subr.bf16.mxu0 0
        %1114 = vmatpush1.bf16.msra.mxu0 0
        %1115 = vmatprep.subr.bf16.mxu0 0
        %1116 = vmatpush1.bf16.msra.mxu0 0
        %1117 = vmatprep.subr.bf16.mxu0 0
        %1118 = vmatpush1.bf16.msra.mxu0 0
        %1119 = vmatprep.subr.bf16.mxu0 0
        %1120 = vmatpush1.bf16.msra.mxu0 0
        %1121 = vmatprep.subr.bf16.mxu0 0
        %1122 = vmatpush1.bf16.msra.mxu0 0
        %1123 = vmatprep.subr.bf16.mxu0 0
        %1124 = vmatpush1.bf16.msra.mxu0 0
        %1125 = vmatprep.subr.bf16.mxu0 0
        %1126 = vmatpush1.bf16.msra.mxu0 0
        %1127 = vmatprep.subr.bf16.mxu0 0
        %1128 = vmatpush1.bf16.msra.mxu0 %v1075
        %1129 = vmatprep.subr.bf16.mxu0 0
        %1130 = vmatpush2.bf16.msra.mxu0 0
        %1131 = vmatprep.subr.bf16.mxu0 0
        %1132 = vmatpush2.bf16.msra.mxu0 0
        %1133 = vmatprep.subr.bf16.mxu0 0
        %1134 = vmatpush2.bf16.msra.mxu0 0
        %1135 = vmatprep.subr.bf16.mxu0 0
        %1136 = vmatpush2.bf16.msra.mxu0 0
        %1137 = vmatprep.subr.bf16.mxu0 0
        %1138 = vmatpush2.bf16.msra.mxu0 0
        %1139 = vmatprep.subr.bf16.mxu0 0
        %1140 = vmatpush2.bf16.msra.mxu0 0
        %1141 = vmatprep.subr.bf16.mxu0 0
        %1142 = vmatpush2.bf16.msra.mxu0 0
        %1143 = vmatprep.subr.bf16.mxu0 0
        %1144 = vmatpush2.bf16.msra.mxu0 0
        %1145 = vmatprep.mubr.bf16.mxu0 0
        %1146 = vmatmul.mubr.bf16.gmra.mxu0 %v1108
        %v1147 = vpop.f32.mrf.mxu0
        %v1148 = vadd.f32 %v1083, %v1147
        %v1149 = vpop.f32.mrf.mxu0
        %v1150 = vpop.f32.mrf.mxu0
        %v1151 = vadd.f32 %v1087, %v1150
        %v1152 = vpop.f32.mrf.mxu0
        %1153 = vmatprep.mubr.bf16.mxu0 0
        %1154 = vmatmul.mubr.bf16.gmra.mxu0 %v1111
        %v1155 = vpop.f32.mrf.mxu0
        %v1156 = vadd.f32 %v1091, %v1155
        %v1157 = vpop.f32.mrf.mxu0
        %v1158 = vpop.f32.mrf.mxu0
        %v1159 = vadd.f32 %v1095, %v1158
        %v1160 = vpop.f32.mrf.mxu0
        %1161 = vdwg.mxu0
        %v1162 = vadd.f32 %v836, %v1148
        %v1163 = vadd.f32 %v837, %v1151
        %v1164 = vadd.f32 %v838, %v1156
        %v1165 = vadd.f32 %v839, %v1159
        %v1166 = vld [vmem:[%s7] sm:$0xf]
        %v1167 = vpack.c.bf16 %v1163, %v1162
        %v1168 = vpack.c.bf16 %v1165, %v1164
        %v1169 = vld [vmem:[%s8] sm:$0xff]
        %1171 = vset.pattern.permute.xlu0 0
        %1172 = vperm.xlu0 %1171, %v1169
        %v1173 = vpop.permute.xlu0 %1172
        %v1176 = vsel %vm580, %v1166, 0
        %1178 = vmatprep.subr.bf16.mxu0 0
        %1179 = vmatpush1.bf16.msra.mxu0 0
        %1180 = vmatprep.subr.bf16.mxu0 0
        %1181 = vmatpush1.bf16.msra.mxu0 0
        %1182 = vmatprep.subr.bf16.mxu0 0
        %1183 = vmatpush1.bf16.msra.mxu0 0
        %1184 = vmatprep.subr.bf16.mxu0 0
        %1185 = vmatpush1.bf16.msra.mxu0 0
        %1186 = vmatprep.subr.bf16.mxu0 0
        %1187 = vmatpush1.bf16.msra.mxu0 0
        %1188 = vmatprep.subr.bf16.mxu0 0
        %1189 = vmatpush1.bf16.msra.mxu0 0
        %1190 = vmatprep.subr.bf16.mxu0 0
        %1191 = vmatpush1.bf16.msra.mxu0 %v1168
        %1192 = vmatprep.subr.bf16.mxu0 0
        %1193 = vmatpush1.bf16.msra.mxu0 %v1167
        %1194 = vmatprep.subr.bf16.mxu0 0
        %1195 = vmatpush2.bf16.msra.mxu0 0
        %1196 = vmatprep.subr.bf16.mxu0 0
        %1197 = vmatpush2.bf16.msra.mxu0 0
        %1198 = vmatprep.subr.bf16.mxu0 0
        %1199 = vmatpush2.bf16.msra.mxu0 0
        %1200 = vmatprep.subr.bf16.mxu0 0
        %1201 = vmatpush2.bf16.msra.mxu0 0
        %1202 = vmatprep.subr.bf16.mxu0 0
        %1203 = vmatpush2.bf16.msra.mxu0 0
        %1204 = vmatprep.subr.bf16.mxu0 0
        %1205 = vmatpush2.bf16.msra.mxu0 0
        %1206 = vmatprep.subr.bf16.mxu0 0
        %1207 = vmatpush2.bf16.msra.mxu0 0
        %1208 = vmatprep.subr.bf16.mxu0 0
        %1209 = vmatpush2.bf16.msra.mxu0 0
        %1210 = vmatprep.mubr.bf16.mxu0 0
        %1211 = vmatmul.mubr.bf16.gmra.mxu0 %v1176
        %v1212 = vpop.f32.mrf.mxu0
        %v1213 = vadd.f32 %v1173, %v1212
        %v1214 = vpop.f32.mrf.mxu0
        %v1215 = vpop.f32.mrf.mxu0
        %v1216 = vpop.f32.mrf.mxu0
        %1217 = vdwg.mxu0
        %1219 = vrot.lane.b32.xlu0 %v1213, 122
        %v1220 = vpop.permute.xlu0 %1219
        %1222 = vst.msk [vmem:[%s345] sm:$0xff] %vm780, %v1220
        %s1223 = sand.u32 %s241, 1
        %s1224 = scalar_lea.sflag [#allocation3], %s1223
        %s1225 = sand.u32 %s241, 1
        %s1226 = smul.addr %s1225, 8
        %s1227 = scalar_lea.vmem [#allocation2], %s1226
        // Predicated region
        $region57: #{tcn_forward.1} parent=55 // pred_check
          %p1228 = pneg %p251
        $region58: #{tcn_forward.1} parent=55 // pred_check_branch
          %1230 = sbr.rel (%p1228) target = $region60
        $region59: #{tcn_forward.1} parent=55 // pred_region
          %s1232 = ssub.s32 128, 128
          %1233 = vsyncadd %s1224, %s1232
          %s1234 = sadd.s32 %s27, %s28
          %s1235 = smul.addr %s1234, 128
          %s1236 = scalar_lea.hbm %s9, %s1235
          %s1238 = sshll.u32 %s1227, 4
          %s1239 = int_to_ptr.vmem [resolvable:$true] %s1238
          %1241 = dma.vmem_to_hbm [thread:$0]  %s1239, 128, %s1236, %s1224
        $region60: #{tcn_forward.1} parent=55 // pred_fallthru
          _
      $region56: #{tcn_forward.1} parent=5 // pred_fallthru
        _
      %p1242 = scmp.le.s32.totalorder 2, %s18
      // Predicated region
      $region61: #{tcn_forward.1} parent=5 // pred_check
        %p1243 = pneg %p1242
      $region62: #{tcn_forward.1} parent=5 // pred_check_branch
        %1245 = sbr.rel (%p1243) target = $region64
      $region63: #{tcn_forward.1} parent=5 // pred_region
        %s1246 = ssub.s32 %s18, 2
        // Predicated region
        $region65: #{tcn_forward.1} parent=63 // pred_check
          %p1247 = pneg %p257
        $region66: #{tcn_forward.1} parent=63 // pred_check_branch
          %1249 = sbr.rel (%p1247) target = $region68
        $region67: #{tcn_forward.1} parent=63 // pred_region
          %s1250 = sand.u32 %s242, 1
          %s1251 = scalar_lea.sflag [#allocation3], %s1250
          %s1252 = sand.u32 %s242, 1
          %s1253 = smul.addr %s1252, 8
          %s1254 = scalar_lea.vmem [#allocation2], %s1253
          %1255 = dma.done %s1251, 128
        $region68: #{tcn_forward.1} parent=63 // pred_fallthru
          _
      $region64: #{tcn_forward.1} parent=5 // pred_fallthru
        _
    $region6: #{tcn_forward.1} parent=1 // loop_footer
      %s22 = sadd.s32 1, %s18
    $region7: #{tcn_forward.1} parent=1 // loop_footer_branch
      %17 = sbr.rel target = $region3
    $region8: #{tcn_forward.1} parent=1 // loop_exit
      _
    %1256 = vsyncpa [#allocation3], 1
    %s1257 = scalar_lea.sflag [#allocation3], 1
    %1258 = vsyncpa %s1257, 1

</llo_original>
